<compile_context>
chip_gen: v5e
topology: v5e:2x2
jax: 0.10.0
libtpu: 0.0.40
codegen_flags: <defaults>
</compile_context>

<pallas_src>
import functools

import jax
import jax.numpy as jnp
from jax import lax
from jax.experimental import pallas as pl
from jax.experimental.pallas import tpu as pltpu

LN_EPS = 1e-5


def _round_up(n, m):
    return ((n + m - 1) // m) * m


def _layernorm_padded(h, gamma, beta, d_true):
    """LayerNorm over the last dim where h/gamma/beta are zero-padded beyond d_true.

    Uses E[x]=sum/d_true and Var=E[x^2]-E[x]^2 so the zero padding contributes
    nothing, and (because gamma/beta are zero in the pad region) the padded
    lanes of the result stay exactly zero.
    """
    s = jnp.sum(h, axis=-1, keepdims=True)
    mu = s / d_true
    ss = jnp.sum(h * h, axis=-1, keepdims=True)
    var = jnp.maximum(ss / d_true - mu * mu, 0.0)
    return (h - mu) * lax.rsqrt(var + LN_EPS) * gamma + beta


def encoder_stack_kernel(x_ref,
                         wqkv_ref, bqkv_ref, wo_ref, bo_ref,
                         ln1g_ref, ln1b_ref,
                         w1_ref, b1_ref, w2_ref, b2_ref,
                         ln2g_ref, ln2b_ref,
                         fng_ref, fnb_ref,
                         xo_ref, attn_ref,
                         *, d_true, scale, apply_final_norm):
    l = pl.program_id(0)
    n_layers = pl.num_programs(0)

    # Initialize the VMEM-resident activation carry from the HBM input once.
    @pl.when(l == 0)
    def _():
        xo_ref[...] = x_ref[...]

    x = xo_ref[...].astype(jnp.float32)            # (B, L, Dp) carry, f32
    x_bf = x.astype(jnp.bfloat16)
    dp = x.shape[-1]

    # ---- fused QKV projection (one big MXU matmul, bf16 operands, f32 acc) ----
    qkv = lax.dot_general(x_bf, wqkv_ref[0],
                          (((2,), (0,)), ((), ())),
                          preferred_element_type=jnp.float32) + bqkv_ref[0]
    q = qkv[:, :, :dp]
    k = qkv[:, :, dp:2 * dp]
    v = qkv[:, :, 2 * dp:]

    # ---- attention: scores via batched dot_general (no explicit k transpose) ----
    scores = lax.dot_general(q.astype(jnp.bfloat16), k.astype(jnp.bfloat16),
                             (((2,), (2,)), ((0,), (0,))),
                             preferred_element_type=jnp.float32) * scale
    m = jnp.max(scores, axis=-1, keepdims=True)
    p = jnp.exp(scores - m)
    inv = pl.reciprocal(jnp.sum(p, axis=-1, keepdims=True), approx=True)  # EUP
    attn = p * inv                                  # (B, L, L), f32
    attn_ref[0] = attn.astype(attn_ref.dtype)

    ctx = lax.dot_general(attn.astype(jnp.bfloat16), v.astype(jnp.bfloat16),
                          (((2,), (1,)), ((0,), (0,))),
                          preferred_element_type=jnp.float32)
    o = lax.dot_general(ctx.astype(jnp.bfloat16), wo_ref[0],
                        (((2,), (0,)), ((), ())),
                        preferred_element_type=jnp.float32) + bo_ref[0]

    # residual + LayerNorm (f32, padding-aware)
    h = _layernorm_padded(x + o, ln1g_ref[0], ln1b_ref[0], d_true)

    # ---- feed-forward ----
    f = lax.dot_general(h.astype(jnp.bfloat16), w1_ref[0],
                        (((2,), (0,)), ((), ())),
                        preferred_element_type=jnp.float32) + b1_ref[0]
    f = jnp.maximum(f, 0.0)
    f = lax.dot_general(f.astype(jnp.bfloat16), w2_ref[0],
                        (((2,), (0,)), ((), ())),
                        preferred_element_type=jnp.float32) + b2_ref[0]

    y = _layernorm_padded(h + f, ln2g_ref[0], ln2b_ref[0], d_true)

    if apply_final_norm:
        @pl.when(l == n_layers - 1)
        def _():
            xo_ref[...] = _layernorm_padded(
                y, fng_ref[...], fnb_ref[...], d_true).astype(xo_ref.dtype)

        @pl.when(l < n_layers - 1)
        def _():
            xo_ref[...] = y.astype(xo_ref.dtype)
    else:
        xo_ref[...] = y.astype(xo_ref.dtype)


def encoder_forward(x, edge_index, layer_params, norm_params, attn_mask=None):
    """Mirrors Encoder.forward with conv_layers=None."""
    # TODO(synk): edge_index / attn_mask are accepted (as in the PyTorch
    # signature) but unused by this concrete self-attention instantiation.
    del edge_index, attn_mask

    B, L, D = x.shape
    n_layers = len(layer_params)
    Dff = layer_params[0]["w1"].shape[1]
    Dp = _round_up(D, 128)
    Dffp = _round_up(Dff, 128)
    scale = 1.0 / (D ** 0.5)

    def pad2(w, r, c):
        return jnp.pad(w, ((0, r - w.shape[0]), (0, c - w.shape[1])))

    # --- pack + zero-pad parameters to lane-dense shapes; weights in bf16 ---
    wqkv_all = jnp.stack([
        jnp.concatenate([pad2(p["wq"], Dp, Dp),
                         pad2(p["wk"], Dp, Dp),
                         pad2(p["wv"], Dp, Dp)], axis=1)
        for p in layer_params]).astype(jnp.bfloat16)            # (n, Dp, 3Dp)
    bqkv_all = jnp.stack([
        jnp.concatenate([pad2(p["bq"], 1, Dp),
                         pad2(p["bk"], 1, Dp),
                         pad2(p["bv"], 1, Dp)], axis=1)
        for p in layer_params]).astype(jnp.float32)             # (n, 1, 3Dp)
    wo_all = jnp.stack([pad2(p["wo"], Dp, Dp) for p in layer_params]).astype(jnp.bfloat16)
    bo_all = jnp.stack([pad2(p["bo"], 1, Dp) for p in layer_params]).astype(jnp.float32)
    ln1g_all = jnp.stack([pad2(p["ln1_g"], 1, Dp) for p in layer_params]).astype(jnp.float32)
    ln1b_all = jnp.stack([pad2(p["ln1_b"], 1, Dp) for p in layer_params]).astype(jnp.float32)
    w1_all = jnp.stack([pad2(p["w1"], Dp, Dffp) for p in layer_params]).astype(jnp.bfloat16)
    b1_all = jnp.stack([pad2(p["b1"], 1, Dffp) for p in layer_params]).astype(jnp.float32)
    w2_all = jnp.stack([pad2(p["w2"], Dffp, Dp) for p in layer_params]).astype(jnp.bfloat16)
    b2_all = jnp.stack([pad2(p["b2"], 1, Dp) for p in layer_params]).astype(jnp.float32)
    ln2g_all = jnp.stack([pad2(p["ln2_g"], 1, Dp) for p in layer_params]).astype(jnp.float32)
    ln2b_all = jnp.stack([pad2(p["ln2_b"], 1, Dp) for p in layer_params]).astype(jnp.float32)

    apply_final_norm = norm_params is not None
    if apply_final_norm:
        fng = pad2(norm_params["gamma"], 1, Dp).astype(jnp.float32)
        fnb = pad2(norm_params["beta"], 1, Dp).astype(jnp.float32)
    else:
        fng = jnp.zeros((1, Dp), jnp.float32)
        fnb = jnp.zeros((1, Dp), jnp.float32)

    x_pad = jnp.pad(x, ((0, 0), (0, 0), (0, Dp - D)))

    per_layer = lambda shape: pl.BlockSpec(shape, lambda l: (l,) + (0,) * (len(shape) - 1))
    const = lambda shape: pl.BlockSpec(shape, lambda l: tuple(0 for _ in shape))

    in_specs = [
        const((B, L, Dp)),                               # x (loaded once)
        per_layer((1, Dp, 3 * Dp)), per_layer((1, 1, 3 * Dp)),   # wqkv, bqkv
        per_layer((1, Dp, Dp)), per_layer((1, 1, Dp)),           # wo, bo
        per_layer((1, 1, Dp)), per_layer((1, 1, Dp)),            # ln1 g, b
        per_layer((1, Dp, Dffp)), per_layer((1, 1, Dffp)),       # w1, b1
        per_layer((1, Dffp, Dp)), per_layer((1, 1, Dp)),         # w2, b2
        per_layer((1, 1, Dp)), per_layer((1, 1, Dp)),            # ln2 g, b
        const((1, Dp)), const((1, Dp)),                          # final norm g, b
    ]
    out_specs = [
        const((B, L, Dp)),                               # x carry / final output
        per_layer((1, B, L, L)),                         # per-layer attention
    ]

    x_out_pad, attn_all = pl.pallas_call(
        functools.partial(encoder_stack_kernel, d_true=float(D), scale=scale,
                          apply_final_norm=apply_final_norm),
        out_shape=(jax.ShapeDtypeStruct((B, L, Dp), x.dtype),
                   jax.ShapeDtypeStruct((n_layers, B, L, L), jnp.float32)),
        grid_spec=pltpu.PrefetchScalarGridSpec(
            num_scalar_prefetch=0, grid=(n_layers,),
            in_specs=in_specs, out_specs=out_specs),
        compiler_params=pltpu.CompilerParams(
            dimension_semantics=("arbitrary",)),   # layer axis is a carry
    )(x_pad,
      wqkv_all, bqkv_all, wo_all, bo_all,
      ln1g_all, ln1b_all,
      w1_all, b1_all, w2_all, b2_all,
      ln2g_all, ln2b_all,
      fng, fnb)

    x_out = x_out_pad[:, :, :D]
    attns = [attn_all[i] for i in range(n_layers)]
    return x_out, attns


def init_params(key, n_layers, D, Dff):
    layers = []
    for i in range(n_layers):
        k = jax.random.fold_in(key, i)
        ks = jax.random.split(k, 6)
        s = 0.05
        layers.append(dict(
            wq=s * jax.random.normal(ks[0], (D, D), jnp.float32),
            bq=jnp.zeros((1, D), jnp.float32),
            wk=s * jax.random.normal(ks[1], (D, D), jnp.float32),
            bk=jnp.zeros((1, D), jnp.float32),
            wv=s * jax.random.normal(ks[2], (D, D), jnp.float32),
            bv=jnp.zeros((1, D), jnp.float32),
            wo=s * jax.random.normal(ks[3], (D, D), jnp.float32),
            bo=jnp.zeros((1, D), jnp.float32),
            ln1_g=jnp.ones((1, D), jnp.float32),
            ln1_b=jnp.zeros((1, D), jnp.float32),
            w1=s * jax.random.normal(ks[4], (D, Dff), jnp.float32),
            b1=jnp.zeros((1, Dff), jnp.float32),
            w2=s * jax.random.normal(ks[5], (Dff, D), jnp.float32),
            b2=jnp.zeros((1, D), jnp.float32),
            ln2_g=jnp.ones((1, D), jnp.float32),
            ln2_b=jnp.zeros((1, D), jnp.float32),
        ))
    norm = dict(gamma=jnp.ones((1, D), jnp.float32),
                beta=jnp.zeros((1, D), jnp.float32))
    return layers, norm


def reference_forward(x, layer_params, norm_params):
    """Pure-JAX f32 reference mirroring the PyTorch module."""
    def ln(h, g, b):
        mu = jnp.mean(h, axis=-1, keepdims=True)
        var = jnp.mean((h - mu) ** 2, axis=-1, keepdims=True)
        return (h - mu) / jnp.sqrt(var + LN_EPS) * g + b

    D = x.shape[-1]
    attns = []
    for p in layer_params:
        q = x @ p["wq"] + p["bq"]
        k = x @ p["wk"] + p["bk"]
        v = x @ p["wv"] + p["bv"]
        s = jnp.einsum("bqd,bkd->bqk", q, k) / jnp.sqrt(float(D))
        a = jax.nn.softmax(s, axis=-1)
        ctx = jnp.einsum("bqk,bkd->bqd", a, v)
        o = ctx @ p["wo"] + p["bo"]
        h = ln(x + o, p["ln1_g"], p["ln1_b"])
        f = jnp.maximum(h @ p["w1"] + p["b1"], 0.0) @ p["w2"] + p["b2"]
        x = ln(h + f, p["ln2_g"], p["ln2_b"])
        attns.append(a)
    if norm_params is not None:
        x = ln(x, norm_params["gamma"], norm_params["beta"])
    return x, attns


if __name__ == "__main__":
    B, L, D, Dff, n_layers = 2, 8, 32, 64, 2
    key = jax.random.PRNGKey(0)
    kx, kp = jax.random.split(key)

    x = jax.random.normal(kx, (B, L, D), jnp.float32)          # layout: (B, L, D)
    edge_index = jnp.stack([jnp.arange(L), (jnp.arange(L) + 1) % L]).astype(jnp.int32)

    layer_params, norm_params = init_params(kp, n_layers, D, Dff)

    x_out, attns = encoder_forward(x, edge_index, layer_params, norm_params)
    jax.block_until_ready(x_out)
    for a in attns:
        jax.block_until_ready(a)

    assert x_out.shape == (B, L, D)
    assert len(attns) == n_layers and attns[0].shape == (B, L, L)
    # attention rows must sum to 1 (approx reciprocal -> loose tolerance)
    assert jnp.allclose(jnp.sum(attns[0], axis=-1), 1.0, atol=1e-2)

    # compare against a pure-JAX f32 reference (bf16 MXU operands -> loose tol)
    x_ref, attns_ref = reference_forward(x, layer_params, norm_params)
    assert jnp.allclose(x_out, x_ref, atol=7.5e-2), float(jnp.max(jnp.abs(x_out - x_ref)))
    assert jnp.allclose(attns[0], attns_ref[0], atol=1e-2)

    print("KERNEL_OK")
</pallas_src>

<mosaic_0001>
module attributes {stable_mosaic.version = 11 : i64} {
  func.func @encoder_stack_kernel(%arg0: i32, %arg1: memref<2x8x128xf32, #tpu.memory_space<vmem>>, %arg2: memref<1x128x384xbf16, #tpu.memory_space<vmem>>, %arg3: memref<1x1x384xf32, #tpu.memory_space<vmem>>, %arg4: memref<1x128x128xbf16, #tpu.memory_space<vmem>>, %arg5: memref<1x1x128xf32, #tpu.memory_space<vmem>>, %arg6: memref<1x1x128xf32, #tpu.memory_space<vmem>>, %arg7: memref<1x1x128xf32, #tpu.memory_space<vmem>>, %arg8: memref<1x128x128xbf16, #tpu.memory_space<vmem>>, %arg9: memref<1x1x128xf32, #tpu.memory_space<vmem>>, %arg10: memref<1x128x128xbf16, #tpu.memory_space<vmem>>, %arg11: memref<1x1x128xf32, #tpu.memory_space<vmem>>, %arg12: memref<1x1x128xf32, #tpu.memory_space<vmem>>, %arg13: memref<1x1x128xf32, #tpu.memory_space<vmem>>, %arg14: memref<1x128xf32, #tpu.memory_space<vmem>>, %arg15: memref<1x128xf32, #tpu.memory_space<vmem>>, %arg16: memref<2x8x128xf32, #tpu.memory_space<vmem>>, %arg17: memref<1x2x8x8xf32, #tpu.memory_space<vmem>>) attributes {dimension_semantics = [#tpu.dimension_semantics<arbitrary>], iteration_bounds = array<i64: 2>, scalar_prefetch = 0 : i64, scratch_operands = 0 : i64, tpu.core_type = #tpu.core_type<tc>, window_params = [{pipeline_mode = #tpu.pipeline_mode<synchronous>, transform_indices = @transform_0, window_bounds = array<i64: 2, 8, 128>}, {transform_indices = @transform_1, window_bounds = array<i64: 1, 128, 384>}, {transform_indices = @transform_2, window_bounds = array<i64: 1, 1, 384>}, {transform_indices = @transform_3, window_bounds = array<i64: 1, 128, 128>}, {transform_indices = @transform_4, window_bounds = array<i64: 1, 1, 128>}, {transform_indices = @transform_5, window_bounds = array<i64: 1, 1, 128>}, {transform_indices = @transform_6, window_bounds = array<i64: 1, 1, 128>}, {transform_indices = @transform_7, window_bounds = array<i64: 1, 128, 128>}, {transform_indices = @transform_8, window_bounds = array<i64: 1, 1, 128>}, {transform_indices = @transform_9, window_bounds = array<i64: 1, 128, 128>}, {transform_indices = @transform_10, window_bounds = array<i64: 1, 1, 128>}, {transform_indices = @transform_11, window_bounds = array<i64: 1, 1, 128>}, {transform_indices = @transform_12, window_bounds = array<i64: 1, 1, 128>}, {pipeline_mode = #tpu.pipeline_mode<synchronous>, transform_indices = @transform_13, window_bounds = array<i64: 1, 128>}, {pipeline_mode = #tpu.pipeline_mode<synchronous>, transform_indices = @transform_14, window_bounds = array<i64: 1, 128>}, {pipeline_mode = #tpu.pipeline_mode<synchronous>, transform_indices = @transform_15, window_bounds = array<i64: 2, 8, 128>}, {transform_indices = @transform_16, window_bounds = array<i64: 1, 2, 8, 8>}]} {
    %c0_i32 = arith.constant 0 : i32
    %0 = arith.cmpi eq, %arg0, %c0_i32 : i32
    %1 = arith.extui %0 : i1 to i32
    %c0_i32_0 = arith.constant 0 : i32
    %2 = arith.cmpi ne, %1, %c0_i32_0 : i32
    scf.if %2 {
      %c0_67 = arith.constant 0 : index
      %c0_68 = arith.constant 0 : index
      %c0_69 = arith.constant 0 : index
      %134 = vector.load %arg1[%c0_67, %c0_68, %c0_69] : memref<2x8x128xf32, #tpu.memory_space<vmem>>, vector<2x8x128xf32>
      %c0_70 = arith.constant 0 : index
      %c0_71 = arith.constant 0 : index
      %c0_72 = arith.constant 0 : index
      %135 = vector.load %arg16[%c0_70, %c0_71, %c0_72] : memref<2x8x128xf32, #tpu.memory_space<vmem>>, vector<2x8x128xf32>
      tpu.vector_store %arg16[%c0_70, %c0_71, %c0_72], %134 {strides = array<i32>} : memref<2x8x128xf32, #tpu.memory_space<vmem>>, vector<2x8x128xf32>,
    } else {
    }
    %c0 = arith.constant 0 : index
    %c0_1 = arith.constant 0 : index
    %c0_2 = arith.constant 0 : index
    %3 = vector.load %arg16[%c0, %c0_1, %c0_2] : memref<2x8x128xf32, #tpu.memory_space<vmem>>, vector<2x8x128xf32>
    %4 = arith.truncf %3 : vector<2x8x128xf32> to vector<2x8x128xbf16>
    %c0_3 = arith.constant 0 : index
    %c0_4 = arith.constant 0 : index
    %c0_5 = arith.constant 0 : index
    %5 = vector.load %arg2[%c0_3, %c0_4, %c0_5] : memref<1x128x384xbf16, #tpu.memory_space<vmem>>, vector<1x128x384xbf16>
    %6 = vector.shape_cast %5 : vector<1x128x384xbf16> to vector<128x384xbf16>
    %cst = arith.constant dense<0.000000e+00> : vector<2x8x384xf32>
    %7 = tpu.matmul %4, %6, %cst {dimension_numbers = #tpu.dot_dimension_numbers<[2], [0], [0, 1], [1], [0, 0, 0, 1, 1, 1], [], []>} : vector<2x8x128xbf16>, vector<128x384xbf16>, vector<2x8x384xf32> -> vector<2x8x384xf32>
    %c0_6 = arith.constant 0 : index
    %c0_7 = arith.constant 0 : index
    %c0_8 = arith.constant 0 : index
    %8 = vector.load %arg3[%c0_6, %c0_7, %c0_8] : memref<1x1x384xf32, #tpu.memory_space<vmem>>, vector<1x1x384xf32>
    %9 = vector.shape_cast %8 : vector<1x1x384xf32> to vector<1x384xf32>
    %10 = vector.shape_cast %9 : vector<1x384xf32> to vector<1x1x384xf32>
    %11 = vector.broadcast %10 : vector<1x1x384xf32> to vector<2x8x384xf32>
    %12 = arith.addf %7, %11 : vector<2x8x384xf32>
    %13 = vector.extract_strided_slice %12 {offsets = [0, 0, 0], sizes = [2, 8, 128], strides = [1, 1, 1]} : vector<2x8x384xf32> to vector<2x8x128xf32>
    %14 = vector.extract_strided_slice %12 {offsets = [0, 0, 128], sizes = [2, 8, 128], strides = [1, 1, 1]} : vector<2x8x384xf32> to vector<2x8x128xf32>
    %15 = vector.extract_strided_slice %12 {offsets = [0, 0, 256], sizes = [2, 8, 128], strides = [1, 1, 1]} : vector<2x8x384xf32> to vector<2x8x128xf32>
    %16 = arith.truncf %13 : vector<2x8x128xf32> to vector<2x8x128xbf16>
    %17 = arith.truncf %14 : vector<2x8x128xf32> to vector<2x8x128xbf16>
    %cst_9 = arith.constant dense<0.000000e+00> : vector<2x8x8xf32>
    %18 = tpu.matmul %16, %17, %cst_9 {dimension_numbers = #tpu.dot_dimension_numbers<[2], [2], [1], [1], [0, 0, 0, 1, 1, 1], [0], [0]>} : vector<2x8x128xbf16>, vector<2x8x128xbf16>, vector<2x8x8xf32> -> vector<2x8x8xf32>
    %cst_10 = arith.constant 0.176776692 : f32
    %19 = vector.broadcast %cst_10 : f32 to vector<2x8x8xf32>
    %20 = arith.mulf %18, %19 : vector<2x8x8xf32>
    %cst_11 = arith.constant dense<0xFF800000> : vector<2x8xf32>
    %21 = vector.multi_reduction <maximumf>, %20, %cst_11 [2] : vector<2x8x8xf32> to vector<2x8xf32>
    %22 = vector.shape_cast %21 : vector<2x8xf32> to vector<2x8x1xf32>
    %23 = vector.broadcast %22 : vector<2x8x1xf32> to vector<2x8x8xf32>
    %24 = arith.subf %20, %23 : vector<2x8x8xf32>
    %25 = math.exp %24 : vector<2x8x8xf32>
    %cst_12 = arith.constant dense<0.000000e+00> : vector<2x8xf32>
    %26 = vector.multi_reduction <add>, %25, %cst_12 [2] : vector<2x8x8xf32> to vector<2x8xf32>
    %27 = vector.shape_cast %26 : vector<2x8xf32> to vector<2x8x1xf32>
    %28 = tpu.reciprocal %27 {approx = true} : vector<2x8x1xf32> -> vector<2x8x1xf32>
    %29 = vector.broadcast %28 : vector<2x8x1xf32> to vector<2x8x8xf32>
    %30 = arith.mulf %25, %29 : vector<2x8x8xf32>
    %c0_13 = arith.constant 0 : index
    %c0_14 = arith.constant 0 : index
    %c0_15 = arith.constant 0 : index
    %c0_16 = arith.constant 0 : index
    %31 = vector.load %arg17[%c0_13, %c0_14, %c0_15, %c0_16] : memref<1x2x8x8xf32, #tpu.memory_space<vmem>>, vector<1x2x8x8xf32>
    %32 = vector.shape_cast %31 : vector<1x2x8x8xf32> to vector<2x8x8xf32>
    %33 = vector.shape_cast %30 : vector<2x8x8xf32> to vector<1x2x8x8xf32>
    tpu.vector_store %arg17[%c0_13, %c0_14, %c0_15, %c0_16], %33 {strides = array<i32>} : memref<1x2x8x8xf32, #tpu.memory_space<vmem>>, vector<1x2x8x8xf32>,
    %34 = arith.truncf %30 : vector<2x8x8xf32> to vector<2x8x8xbf16>
    %35 = arith.truncf %15 : vector<2x8x128xf32> to vector<2x8x128xbf16>
    %cst_17 = arith.constant dense<0.000000e+00> : vector<2x8x128xf32>
    %36 = tpu.matmul %34, %35, %cst_17 {dimension_numbers = #tpu.dot_dimension_numbers<[2], [1], [1], [2], [0, 0, 0, 1, 1, 2], [0], [0]>} : vector<2x8x8xbf16>, vector<2x8x128xbf16>, vector<2x8x128xf32> -> vector<2x8x128xf32>
    %37 = arith.truncf %36 : vector<2x8x128xf32> to vector<2x8x128xbf16>
    %c0_18 = arith.constant 0 : index
    %c0_19 = arith.constant 0 : index
    %c0_20 = arith.constant 0 : index
    %38 = vector.load %arg4[%c0_18, %c0_19, %c0_20] : memref<1x128x128xbf16, #tpu.memory_space<vmem>>, vector<1x128x128xbf16>
    %39 = vector.shape_cast %38 : vector<1x128x128xbf16> to vector<128x128xbf16>
    %cst_21 = arith.constant dense<0.000000e+00> : vector<2x8x128xf32>
    %40 = tpu.matmul %37, %39, %cst_21 {dimension_numbers = #tpu.dot_dimension_numbers<[2], [0], [0, 1], [1], [0, 0, 0, 1, 1, 1], [], []>} : vector<2x8x128xbf16>, vector<128x128xbf16>, vector<2x8x128xf32> -> vector<2x8x128xf32>
    %c0_22 = arith.constant 0 : index
    %c0_23 = arith.constant 0 : index
    %c0_24 = arith.constant 0 : index
    %41 = vector.load %arg5[%c0_22, %c0_23, %c0_24] : memref<1x1x128xf32, #tpu.memory_space<vmem>>, vector<1x1x128xf32>
    %42 = vector.shape_cast %41 : vector<1x1x128xf32> to vector<1x128xf32>
    %43 = vector.shape_cast %42 : vector<1x128xf32> to vector<1x1x128xf32>
    %44 = vector.broadcast %43 : vector<1x1x128xf32> to vector<2x8x128xf32>
    %45 = arith.addf %40, %44 : vector<2x8x128xf32>
    %46 = arith.addf %3, %45 : vector<2x8x128xf32>
    %c0_25 = arith.constant 0 : index
    %c0_26 = arith.constant 0 : index
    %c0_27 = arith.constant 0 : index
    %47 = vector.load %arg6[%c0_25, %c0_26, %c0_27] : memref<1x1x128xf32, #tpu.memory_space<vmem>>, vector<1x1x128xf32>
    %48 = vector.shape_cast %47 : vector<1x1x128xf32> to vector<1x128xf32>
    %c0_28 = arith.constant 0 : index
    %c0_29 = arith.constant 0 : index
    %c0_30 = arith.constant 0 : index
    %49 = vector.load %arg7[%c0_28, %c0_29, %c0_30] : memref<1x1x128xf32, #tpu.memory_space<vmem>>, vector<1x1x128xf32>
    %50 = vector.shape_cast %49 : vector<1x1x128xf32> to vector<1x128xf32>
    %cst_31 = arith.constant dense<0.000000e+00> : vector<2x8xf32>
    %51 = vector.multi_reduction <add>, %46, %cst_31 [2] : vector<2x8x128xf32> to vector<2x8xf32>
    %52 = vector.shape_cast %51 : vector<2x8xf32> to vector<2x8x1xf32>
    %cst_32 = arith.constant 3.200000e+01 : f32
    %53 = vector.broadcast %cst_32 : f32 to vector<2x8x1xf32>
    %54 = arith.divf %52, %53 : vector<2x8x1xf32>
    %55 = arith.mulf %46, %46 : vector<2x8x128xf32>
    %cst_33 = arith.constant dense<0.000000e+00> : vector<2x8xf32>
    %56 = vector.multi_reduction <add>, %55, %cst_33 [2] : vector<2x8x128xf32> to vector<2x8xf32>
    %57 = vector.shape_cast %56 : vector<2x8xf32> to vector<2x8x1xf32>
    %cst_34 = arith.constant 3.200000e+01 : f32
    %58 = vector.broadcast %cst_34 : f32 to vector<2x8x1xf32>
    %59 = arith.divf %57, %58 : vector<2x8x1xf32>
    %60 = arith.mulf %54, %54 : vector<2x8x1xf32>
    %61 = arith.subf %59, %60 : vector<2x8x1xf32>
    %cst_35 = arith.constant 0.000000e+00 : f32
    %62 = vector.broadcast %cst_35 : f32 to vector<2x8x1xf32>
    %63 = arith.maximumf %61, %62 : vector<2x8x1xf32>
    %64 = vector.broadcast %54 : vector<2x8x1xf32> to vector<2x8x128xf32>
    %65 = arith.subf %46, %64 : vector<2x8x128xf32>
    %cst_36 = arith.constant 9.99999974E-6 : f32
    %66 = vector.broadcast %cst_36 : f32 to vector<2x8x1xf32>
    %67 = arith.addf %63, %66 : vector<2x8x1xf32>
    %68 = math.rsqrt %67 : vector<2x8x1xf32>
    %69 = vector.broadcast %68 : vector<2x8x1xf32> to vector<2x8x128xf32>
    %70 = arith.mulf %65, %69 : vector<2x8x128xf32>
    %71 = vector.shape_cast %48 : vector<1x128xf32> to vector<1x1x128xf32>
    %72 = vector.broadcast %71 : vector<1x1x128xf32> to vector<2x8x128xf32>
    %73 = arith.mulf %70, %72 : vector<2x8x128xf32>
    %74 = vector.shape_cast %50 : vector<1x128xf32> to vector<1x1x128xf32>
    %75 = vector.broadcast %74 : vector<1x1x128xf32> to vector<2x8x128xf32>
    %76 = arith.addf %73, %75 : vector<2x8x128xf32>
    %77 = arith.truncf %76 : vector<2x8x128xf32> to vector<2x8x128xbf16>
    %c0_37 = arith.constant 0 : index
    %c0_38 = arith.constant 0 : index
    %c0_39 = arith.constant 0 : index
    %78 = vector.load %arg8[%c0_37, %c0_38, %c0_39] : memref<1x128x128xbf16, #tpu.memory_space<vmem>>, vector<1x128x128xbf16>
    %79 = vector.shape_cast %78 : vector<1x128x128xbf16> to vector<128x128xbf16>
    %cst_40 = arith.constant dense<0.000000e+00> : vector<2x8x128xf32>
    %80 = tpu.matmul %77, %79, %cst_40 {dimension_numbers = #tpu.dot_dimension_numbers<[2], [0], [0, 1], [1], [0, 0, 0, 1, 1, 1], [], []>} : vector<2x8x128xbf16>, vector<128x128xbf16>, vector<2x8x128xf32> -> vector<2x8x128xf32>
    %c0_41 = arith.constant 0 : index
    %c0_42 = arith.constant 0 : index
    %c0_43 = arith.constant 0 : index
    %81 = vector.load %arg9[%c0_41, %c0_42, %c0_43] : memref<1x1x128xf32, #tpu.memory_space<vmem>>, vector<1x1x128xf32>
    %82 = vector.shape_cast %81 : vector<1x1x128xf32> to vector<1x128xf32>
    %83 = vector.shape_cast %82 : vector<1x128xf32> to vector<1x1x128xf32>
    %84 = vector.broadcast %83 : vector<1x1x128xf32> to vector<2x8x128xf32>
    %85 = arith.addf %80, %84 : vector<2x8x128xf32>
    %cst_44 = arith.constant 0.000000e+00 : f32
    %86 = vector.broadcast %cst_44 : f32 to vector<2x8x128xf32>
    %87 = arith.maximumf %85, %86 : vector<2x8x128xf32>
    %88 = arith.truncf %87 : vector<2x8x128xf32> to vector<2x8x128xbf16>
    %c0_45 = arith.constant 0 : index
    %c0_46 = arith.constant 0 : index
    %c0_47 = arith.constant 0 : index
    %89 = vector.load %arg10[%c0_45, %c0_46, %c0_47] : memref<1x128x128xbf16, #tpu.memory_space<vmem>>, vector<1x128x128xbf16>
    %90 = vector.shape_cast %89 : vector<1x128x128xbf16> to vector<128x128xbf16>
    %cst_48 = arith.constant dense<0.000000e+00> : vector<2x8x128xf32>
    %91 = tpu.matmul %88, %90, %cst_48 {dimension_numbers = #tpu.dot_dimension_numbers<[2], [0], [0, 1], [1], [0, 0, 0, 1, 1, 1], [], []>} : vector<2x8x128xbf16>, vector<128x128xbf16>, vector<2x8x128xf32> -> vector<2x8x128xf32>
    %c0_49 = arith.constant 0 : index
    %c0_50 = arith.constant 0 : index
    %c0_51 = arith.constant 0 : index
    %92 = vector.load %arg11[%c0_49, %c0_50, %c0_51] : memref<1x1x128xf32, #tpu.memory_space<vmem>>, vector<1x1x128xf32>
    %93 = vector.shape_cast %92 : vector<1x1x128xf32> to vector<1x128xf32>
    %94 = vector.shape_cast %93 : vector<1x128xf32> to vector<1x1x128xf32>
    %95 = vector.broadcast %94 : vector<1x1x128xf32> to vector<2x8x128xf32>
    %96 = arith.addf %91, %95 : vector<2x8x128xf32>
    %97 = arith.addf %76, %96 : vector<2x8x128xf32>
    %c0_52 = arith.constant 0 : index
    %c0_53 = arith.constant 0 : index
    %c0_54 = arith.constant 0 : index
    %98 = vector.load %arg12[%c0_52, %c0_53, %c0_54] : memref<1x1x128xf32, #tpu.memory_space<vmem>>, vector<1x1x128xf32>
    %99 = vector.shape_cast %98 : vector<1x1x128xf32> to vector<1x128xf32>
    %c0_55 = arith.constant 0 : index
    %c0_56 = arith.constant 0 : index
    %c0_57 = arith.constant 0 : index
    %100 = vector.load %arg13[%c0_55, %c0_56, %c0_57] : memref<1x1x128xf32, #tpu.memory_space<vmem>>, vector<1x1x128xf32>
    %101 = vector.shape_cast %100 : vector<1x1x128xf32> to vector<1x128xf32>
    %cst_58 = arith.constant dense<0.000000e+00> : vector<2x8xf32>
    %102 = vector.multi_reduction <add>, %97, %cst_58 [2] : vector<2x8x128xf32> to vector<2x8xf32>
    %103 = vector.shape_cast %102 : vector<2x8xf32> to vector<2x8x1xf32>
    %cst_59 = arith.constant 3.200000e+01 : f32
    %104 = vector.broadcast %cst_59 : f32 to vector<2x8x1xf32>
    %105 = arith.divf %103, %104 : vector<2x8x1xf32>
    %106 = arith.mulf %97, %97 : vector<2x8x128xf32>
    %cst_60 = arith.constant dense<0.000000e+00> : vector<2x8xf32>
    %107 = vector.multi_reduction <add>, %106, %cst_60 [2] : vector<2x8x128xf32> to vector<2x8xf32>
    %108 = vector.shape_cast %107 : vector<2x8xf32> to vector<2x8x1xf32>
    %cst_61 = arith.constant 3.200000e+01 : f32
    %109 = vector.broadcast %cst_61 : f32 to vector<2x8x1xf32>
    %110 = arith.divf %108, %109 : vector<2x8x1xf32>
    %111 = arith.mulf %105, %105 : vector<2x8x1xf32>
    %112 = arith.subf %110, %111 : vector<2x8x1xf32>
    %cst_62 = arith.constant 0.000000e+00 : f32
    %113 = vector.broadcast %cst_62 : f32 to vector<2x8x1xf32>
    %114 = arith.maximumf %112, %113 : vector<2x8x1xf32>
    %115 = vector.broadcast %105 : vector<2x8x1xf32> to vector<2x8x128xf32>
    %116 = arith.subf %97, %115 : vector<2x8x128xf32>
    %cst_63 = arith.constant 9.99999974E-6 : f32
    %117 = vector.broadcast %cst_63 : f32 to vector<2x8x1xf32>
    %118 = arith.addf %114, %117 : vector<2x8x1xf32>
    %119 = math.rsqrt %118 : vector<2x8x1xf32>
    %120 = vector.broadcast %119 : vector<2x8x1xf32> to vector<2x8x128xf32>
    %121 = arith.mulf %116, %120 : vector<2x8x128xf32>
    %122 = vector.shape_cast %99 : vector<1x128xf32> to vector<1x1x128xf32>
    %123 = vector.broadcast %122 : vector<1x1x128xf32> to vector<2x8x128xf32>
    %124 = arith.mulf %121, %123 : vector<2x8x128xf32>
    %125 = vector.shape_cast %101 : vector<1x128xf32> to vector<1x1x128xf32>
    %126 = vector.broadcast %125 : vector<1x1x128xf32> to vector<2x8x128xf32>
    %127 = arith.addf %124, %126 : vector<2x8x128xf32>
    %c1_i32 = arith.constant 1 : i32
    %128 = arith.cmpi eq, %arg0, %c1_i32 : i32
    %129 = arith.extui %128 : i1 to i32
    %c0_i32_64 = arith.constant 0 : i32
    %130 = arith.cmpi ne, %129, %c0_i32_64 : i32
    scf.if %130 {
      %c0_67 = arith.constant 0 : index
      %c0_68 = arith.constant 0 : index
      %134 = vector.load %arg14[%c0_67, %c0_68] : memref<1x128xf32, #tpu.memory_space<vmem>>, vector<1x128xf32>
      %c0_69 = arith.constant 0 : index
      %c0_70 = arith.constant 0 : index
      %135 = vector.load %arg15[%c0_69, %c0_70] : memref<1x128xf32, #tpu.memory_space<vmem>>, vector<1x128xf32>
      %cst_71 = arith.constant dense<0.000000e+00> : vector<2x8xf32>
      %136 = vector.multi_reduction <add>, %127, %cst_71 [2] : vector<2x8x128xf32> to vector<2x8xf32>
      %137 = vector.shape_cast %136 : vector<2x8xf32> to vector<2x8x1xf32>
      %cst_72 = arith.constant 3.200000e+01 : f32
      %138 = vector.broadcast %cst_72 : f32 to vector<2x8x1xf32>
      %139 = arith.divf %137, %138 : vector<2x8x1xf32>
      %140 = arith.mulf %127, %127 : vector<2x8x128xf32>
      %cst_73 = arith.constant dense<0.000000e+00> : vector<2x8xf32>
      %141 = vector.multi_reduction <add>, %140, %cst_73 [2] : vector<2x8x128xf32> to vector<2x8xf32>
      %142 = vector.shape_cast %141 : vector<2x8xf32> to vector<2x8x1xf32>
      %cst_74 = arith.constant 3.200000e+01 : f32
      %143 = vector.broadcast %cst_74 : f32 to vector<2x8x1xf32>
      %144 = arith.divf %142, %143 : vector<2x8x1xf32>
      %145 = arith.mulf %139, %139 : vector<2x8x1xf32>
      %146 = arith.subf %144, %145 : vector<2x8x1xf32>
      %cst_75 = arith.constant 0.000000e+00 : f32
      %147 = vector.broadcast %cst_75 : f32 to vector<2x8x1xf32>
      %148 = arith.maximumf %146, %147 : vector<2x8x1xf32>
      %149 = vector.broadcast %139 : vector<2x8x1xf32> to vector<2x8x128xf32>
      %150 = arith.subf %127, %149 : vector<2x8x128xf32>
      %cst_76 = arith.constant 9.99999974E-6 : f32
      %151 = vector.broadcast %cst_76 : f32 to vector<2x8x1xf32>
      %152 = arith.addf %148, %151 : vector<2x8x1xf32>
      %153 = math.rsqrt %152 : vector<2x8x1xf32>
      %154 = vector.broadcast %153 : vector<2x8x1xf32> to vector<2x8x128xf32>
      %155 = arith.mulf %150, %154 : vector<2x8x128xf32>
      %156 = vector.shape_cast %134 : vector<1x128xf32> to vector<1x1x128xf32>
      %157 = vector.broadcast %156 : vector<1x1x128xf32> to vector<2x8x128xf32>
      %158 = arith.mulf %155, %157 : vector<2x8x128xf32>
      %159 = vector.shape_cast %135 : vector<1x128xf32> to vector<1x1x128xf32>
      %160 = vector.broadcast %159 : vector<1x1x128xf32> to vector<2x8x128xf32>
      %161 = arith.addf %158, %160 : vector<2x8x128xf32>
      %c0_77 = arith.constant 0 : index
      %c0_78 = arith.constant 0 : index
      %c0_79 = arith.constant 0 : index
      %162 = vector.load %arg16[%c0_77, %c0_78, %c0_79] : memref<2x8x128xf32, #tpu.memory_space<vmem>>, vector<2x8x128xf32>
      tpu.vector_store %arg16[%c0_77, %c0_78, %c0_79], %161 {strides = array<i32>} : memref<2x8x128xf32, #tpu.memory_space<vmem>>, vector<2x8x128xf32>,
    } else {
    }
    %c1_i32_65 = arith.constant 1 : i32
    %131 = arith.cmpi slt, %arg0, %c1_i32_65 : i32
    %132 = arith.extui %131 : i1 to i32
    %c0_i32_66 = arith.constant 0 : i32
    %133 = arith.cmpi ne, %132, %c0_i32_66 : i32
    scf.if %133 {
      %c0_67 = arith.constant 0 : index
      %c0_68 = arith.constant 0 : index
      %c0_69 = arith.constant 0 : index
      %134 = vector.load %arg16[%c0_67, %c0_68, %c0_69] : memref<2x8x128xf32, #tpu.memory_space<vmem>>, vector<2x8x128xf32>
      tpu.vector_store %arg16[%c0_67, %c0_68, %c0_69], %127 {strides = array<i32>} : memref<2x8x128xf32, #tpu.memory_space<vmem>>, vector<2x8x128xf32>,
    } else {
    }
    return
  }
  func.func @transform_0(%arg0: i32) -> (i32, i32, i32) {
    %c0_i32 = arith.constant 0 : i32
    %c0_i32_0 = arith.constant 0 : i32
    %c0_i32_1 = arith.constant 0 : i32
    %c0_i32_2 = arith.constant 0 : i32
    return %c0_i32, %c0_i32_0, %c0_i32_1 : i32, i32, i32
  }
  func.func @transform_1(%arg0: i32) -> (i32, i32, i32) {
    %c0_i32 = arith.constant 0 : i32
    %c0_i32_0 = arith.constant 0 : i32
    %c0_i32_1 = arith.constant 0 : i32
    return %arg0, %c0_i32, %c0_i32_0 : i32, i32, i32
  }
  func.func @transform_2(%arg0: i32) -> (i32, i32, i32) {
    %c0_i32 = arith.constant 0 : i32
    %c0_i32_0 = arith.constant 0 : i32
    %c0_i32_1 = arith.constant 0 : i32
    return %arg0, %c0_i32, %c0_i32_0 : i32, i32, i32
  }
  func.func @transform_3(%arg0: i32) -> (i32, i32, i32) {
    %c0_i32 = arith.constant 0 : i32
    %c0_i32_0 = arith.constant 0 : i32
    %c0_i32_1 = arith.constant 0 : i32
    return %arg0, %c0_i32, %c0_i32_0 : i32, i32, i32
  }
  func.func @transform_4(%arg0: i32) -> (i32, i32, i32) {
    %c0_i32 = arith.constant 0 : i32
    %c0_i32_0 = arith.constant 0 : i32
    %c0_i32_1 = arith.constant 0 : i32
    return %arg0, %c0_i32, %c0_i32_0 : i32, i32, i32
  }
  func.func @transform_5(%arg0: i32) -> (i32, i32, i32) {
    %c0_i32 = arith.constant 0 : i32
    %c0_i32_0 = arith.constant 0 : i32
    %c0_i32_1 = arith.constant 0 : i32
    return %arg0, %c0_i32, %c0_i32_0 : i32, i32, i32
  }
  func.func @transform_6(%arg0: i32) -> (i32, i32, i32) {
    %c0_i32 = arith.constant 0 : i32
    %c0_i32_0 = arith.constant 0 : i32
    %c0_i32_1 = arith.constant 0 : i32
    return %arg0, %c0_i32, %c0_i32_0 : i32, i32, i32
  }
  func.func @transform_7(%arg0: i32) -> (i32, i32, i32) {
    %c0_i32 = arith.constant 0 : i32
    %c0_i32_0 = arith.constant 0 : i32
    %c0_i32_1 = arith.constant 0 : i32
    return %arg0, %c0_i32, %c0_i32_0 : i32, i32, i32
  }
  func.func @transform_8(%arg0: i32) -> (i32, i32, i32) {
    %c0_i32 = arith.constant 0 : i32
    %c0_i32_0 = arith.constant 0 : i32
    %c0_i32_1 = arith.constant 0 : i32
    return %arg0, %c0_i32, %c0_i32_0 : i32, i32, i32
  }
  func.func @transform_9(%arg0: i32) -> (i32, i32, i32) {
    %c0_i32 = arith.constant 0 : i32
    %c0_i32_0 = arith.constant 0 : i32
    %c0_i32_1 = arith.constant 0 : i32
    return %arg0, %c0_i32, %c0_i32_0 : i32, i32, i32
  }
  func.func @transform_10(%arg0: i32) -> (i32, i32, i32) {
    %c0_i32 = arith.constant 0 : i32
    %c0_i32_0 = arith.constant 0 : i32
    %c0_i32_1 = arith.constant 0 : i32
    return %arg0, %c0_i32, %c0_i32_0 : i32, i32, i32
  }
  func.func @transform_11(%arg0: i32) -> (i32, i32, i32) {
    %c0_i32 = arith.constant 0 : i32
    %c0_i32_0 = arith.constant 0 : i32
    %c0_i32_1 = arith.constant 0 : i32
    return %arg0, %c0_i32, %c0_i32_0 : i32, i32, i32
  }
  func.func @transform_12(%arg0: i32) -> (i32, i32, i32) {
    %c0_i32 = arith.constant 0 : i32
    %c0_i32_0 = arith.constant 0 : i32
    %c0_i32_1 = arith.constant 0 : i32
    return %arg0, %c0_i32, %c0_i32_0 : i32, i32, i32
  }
  func.func @transform_13(%arg0: i32) -> (i32, i32) {
    %c0_i32 = arith.constant 0 : i32
    %c0_i32_0 = arith.constant 0 : i32
    %c0_i32_1 = arith.constant 0 : i32
    return %c0_i32, %c0_i32_0 : i32, i32
  }
  func.func @transform_14(%arg0: i32) -> (i32, i32) {
    %c0_i32 = arith.constant 0 : i32
    %c0_i32_0 = arith.constant 0 : i32
    %c0_i32_1 = arith.constant 0 : i32
    return %c0_i32, %c0_i32_0 : i32, i32
  }
  func.func @transform_15(%arg0: i32) -> (i32, i32, i32) {
    %c0_i32 = arith.constant 0 : i32
    %c0_i32_0 = arith.constant 0 : i32
    %c0_i32_1 = arith.constant 0 : i32
    %c0_i32_2 = arith.constant 0 : i32
    return %c0_i32, %c0_i32_0, %c0_i32_1 : i32, i32, i32
  }
  func.func @transform_16(%arg0: i32) -> (i32, i32, i32, i32) {
    %c0_i32 = arith.constant 0 : i32
    %c0_i32_0 = arith.constant 0 : i32
    %c0_i32_1 = arith.constant 0 : i32
    %c0_i32_2 = arith.constant 0 : i32
    return %arg0, %c0_i32, %c0_i32_0, %c0_i32_1 : i32, i32, i32, i32
  }
}

</mosaic_0001>

<llo_original>
// kernel: tpu_custom_call.1
$region0: #{tpu_custom_call.1}
  #allocation0 [shape = 'u32[]', space=smem, size = 0x4, offset = 0x4, fixed_abs, tag = 'smem constant byte address 0x4 - core index']
  #allocation1 [shape = 'u32[72,128]{1,0:T(1,128)}', space=vmem, size = 0x9000, scoped, tag = 'internal scratch']
  %s0 = inlined_call_operand.hbm [shape: f32[2,8,128], index: 0, kind: input, shape index: {}]
  %s1 = inlined_call_operand.hbm [shape: bf16[2,128,384], index: 1, kind: input, shape index: {}]
  %s2 = inlined_call_operand.hbm [shape: f32[2,1,384], index: 2, kind: input, shape index: {}]
  %s3 = inlined_call_operand.hbm [shape: bf16[2,128,128], index: 3, kind: input, shape index: {}]
  %s4 = inlined_call_operand.vmem [shape: f32[2,1,128], index: 4, kind: input, shape index: {}]
  %s5 = inlined_call_operand.vmem [shape: f32[2,1,128], index: 5, kind: input, shape index: {}]
  %s6 = inlined_call_operand.hbm [shape: f32[2,1,128], index: 6, kind: input, shape index: {}]
  %s7 = inlined_call_operand.hbm [shape: bf16[2,128,128], index: 7, kind: input, shape index: {}]
  %s8 = inlined_call_operand.vmem [shape: f32[2,1,128], index: 8, kind: input, shape index: {}]
  %s9 = inlined_call_operand.hbm [shape: bf16[2,128,128], index: 9, kind: input, shape index: {}]
  %s10 = inlined_call_operand.vmem [shape: f32[2,1,128], index: 10, kind: input, shape index: {}]
  %s11 = inlined_call_operand.vmem [shape: f32[2,1,128], index: 11, kind: input, shape index: {}]
  %s12 = inlined_call_operand.hbm [shape: f32[2,1,128], index: 12, kind: input, shape index: {}]
  %s13 = inlined_call_operand.vmem [shape: f32[1,128], index: 13, kind: input, shape index: {}]
  %s14 = inlined_call_operand.vmem [shape: f32[1,128], index: 14, kind: input, shape index: {}]
  %s15 = inlined_call_operand.hbm [shape: f32[2,8,128], index: 15, kind: output, shape index: {0}]
  %s16 = inlined_call_operand.hbm [shape: f32[2,2,8,8], index: 16, kind: output, shape index: {1}]
  %17 = xla_tuple %s15, %s16
  %s18 = sld [smem:[#allocation0]]
  $region145: #{tpu_custom_call.1} parent=0
    _
  %s20 = ssub.s32 1, %s18
  %s21 = scalar_select 0, %s20, %s18
  $region1: #{tpu_custom_call.1} parent=0
    #allocation2 [shape = 'u8[8192]{0}', space=vmem, size = 0x2000, scoped, tag = 'input window, operand 0, single buffered']
    #allocation3 [shape = 's32[2]{0}', space=sflag, size = 0x8, scoped, tag = 'scoped memory for tpu_custom_call.1']
    #allocation4 [shape = 's32[2]{0}', space=sflag, size = 0x8, scoped, tag = 'scoped memory for tpu_custom_call.1']
    #allocation5 [shape = 'u8[196608]{0}', space=vmem, size = 0x30000, scoped, tag = 'input window, operand 1']
    #allocation6 [shape = 's32[2]{0}', space=sflag, size = 0x8, scoped, tag = 'scoped memory for tpu_custom_call.1']
    #allocation7 [shape = 'u8[3072]{0}', space=vmem, size = 0xc00, scoped, tag = 'input window, operand 2']
    #allocation8 [shape = 'u8[65536]{0}', space=vmem, size = 0x10000, scoped, tag = 'input window, operand 3']
    #allocation9 [shape = 's32[2]{0}', space=sflag, size = 0x8, scoped, tag = 'scoped memory for tpu_custom_call.1']
    #allocation10 [shape = 'u8[1024]{0}', space=vmem, size = 0x400, scoped, tag = 'input window, operand 6']
    #allocation11 [shape = 'u8[65536]{0}', space=vmem, size = 0x10000, scoped, tag = 'input window, operand 7']
    #allocation12 [shape = 's32[2]{0}', space=sflag, size = 0x8, scoped, tag = 'scoped memory for tpu_custom_call.1']
    #allocation13 [shape = 'u8[65536]{0}', space=vmem, size = 0x10000, scoped, tag = 'input window, operand 9']
    #allocation14 [shape = 'u8[1024]{0}', space=vmem, size = 0x400, scoped, tag = 'input window, operand 12']
    #allocation15 [shape = 's32[2]{0}', space=sflag, size = 0x8, scoped, tag = 'scoped memory for tpu_custom_call.1']
    #allocation16 [shape = 'u8[8192]{0}', space=vmem, size = 0x2000, scoped, tag = 'output window, operand 0, single buffered']
    #allocation17 [shape = 'u8[16384]{0}', space=vmem, size = 0x4000, scoped, tag = 'output window, operand 1']
    #allocation18 [shape = 's32[2]{0}', space=sflag, size = 0x8, scoped, tag = 'scoped memory for tpu_custom_call.1']
    %22 = vsyncpa [#allocation3], 0
    %23 = vsyncpa [#allocation6], 0
    %s24 = scalar_lea.sflag [#allocation6], 1
    %25 = vsyncpa %s24, 0
    %26 = vsyncpa [#allocation9], 0
    %s27 = scalar_lea.sflag [#allocation9], 1
    %28 = vsyncpa %s27, 0
    %29 = vsyncpa [#allocation12], 0
    %s30 = scalar_lea.sflag [#allocation12], 1
    %31 = vsyncpa %s30, 0
    %32 = vsyncpa [#allocation15], 0
    %s33 = scalar_lea.sflag [#allocation15], 1
    %34 = vsyncpa %s33, 0
    %35 = vsyncpa [#allocation4], 0
    %36 = vsyncpa [#allocation18], 0
    %s37 = scalar_lea.sflag [#allocation18], 1
    %38 = vsyncpa %s37, 0
    loop: start=0, step=1, limit=4
    $region2: #{tpu_custom_call.1} parent=1 // loop_pre_header
      _
    $region3: #{tpu_custom_call.1} parent=1 // loop_header
      %s40 = sphi 0, %s44
      %p41 = scmp.ge.s32.totalorder %s40, 4
      %s48 = sphi 0, %s48
      %s50 = sphi 0, %s48
      %s51 = sphi 0, %s50
      %s65 = sphi 0, %s51
      %s71 = sphi 0, %s73
      %s74 = sphi 0, %s71
      %s75 = sphi 0, %s74
      %s91 = sphi 0, %s75
      %s97 = sphi 0, %s99
      %s100 = sphi 0, %s97
      %s101 = sphi 0, %s100
      %s117 = sphi 0, %s101
      %s123 = sphi 0, %s125
      %s126 = sphi 0, %s123
      %s127 = sphi 0, %s126
      %s143 = sphi 0, %s127
      %s149 = sphi 0, %s151
      %s152 = sphi 0, %s149
      %s153 = sphi 0, %s152
      %s169 = sphi 0, %s153
      %s175 = sphi 0, %s177
      %s178 = sphi 0, %s175
      %s179 = sphi 0, %s178
      %s195 = sphi 0, %s179
      %s201 = sphi 0, %s203
      %s204 = sphi 0, %s201
      %s205 = sphi 0, %s204
      %s221 = sphi 0, %s205
      %s227 = sphi 0, %s229
      %s230 = sphi 0, %s227
      %s231 = sphi 0, %s230
      %s247 = sphi 0, %s231
      %s253 = sphi 0, %s255
      %s256 = sphi 0, %s253
      %s257 = sphi 0, %s256
      %s273 = sphi 0, %s257
      %s279 = sphi 0, %s281
      %s282 = sphi 0, %s279
      %s283 = sphi 0, %s282
      %s299 = sphi 0, %s283
      %s305 = sphi 0, %s307
      %s308 = sphi 0, %s305
      %s309 = sphi 0, %s308
      %s325 = sphi 0, %s309
      %s331 = sphi 0, %s333
      %s334 = sphi 0, %s331
      %s335 = sphi 0, %s334
      %s351 = sphi 0, %s335
      %s357 = sphi 0, %s359
      %s360 = sphi 0, %s357
      %s361 = sphi 0, %s360
      %s377 = sphi 0, %s361
      %s381 = sphi 0, %s381
      %s383 = sphi 0, %s381
      %s384 = sphi 0, %s383
      %s398 = sphi 0, %s384
      %s402 = sphi 0, %s402
      %s404 = sphi 0, %s402
      %s405 = sphi 0, %s404
      %s419 = sphi 0, %s405
      %s423 = sphi 0, %s423
      %s425 = sphi 0, %s423
      %s426 = sphi 0, %s425
      %s440 = sphi 0, %s426
      %s446 = sphi 0, %s448
      %s449 = sphi 0, %s446
      %s450 = sphi 0, %s449
      %s466 = sphi 0, %s450
    $region4: #{tpu_custom_call.1} parent=1 // loop_header_branch
      %43 = sbr.rel (%p41) target = $region8
    $region5: #{tpu_custom_call.1} parent=1 // loop_body
      %s45 = ssub.s32 %s40, 1
      %s46 = ssub.s32 %s40, 2
      %s47 = sadd.s32 %s40, 1
      %s49 = sadd.s32 %s48, 1
      %p52 = scmp.eq.s32.totalorder %s40, 1
      %p53 = scmp.ne.s32.totalorder %s48, %s50
      %p54 = scmp.eq.s32.totalorder %s40, 0
      %p55 = por %p53, %p54
      %p56 = scmp.ne.s32.totalorder %s48, %s50
      %p57 = scmp.eq.s32.totalorder %s45, 1
      %p58 = por %p56, %p57
      %p59 = scmp.ne.s32.totalorder %s50, %s51
      %p60 = scmp.eq.s32.totalorder %s45, 0
      %p61 = por %p59, %p60
      %p62 = scmp.ne.s32.totalorder %s50, %s51
      %p63 = scmp.eq.s32.totalorder %s46, 1
      %p64 = por %p62, %p63
      %p66 = scmp.ne.s32.totalorder %s51, %s65
      %p67 = scmp.eq.s32.totalorder %s46, 0
      %p68 = por %p66, %p67
      %s69 = ssub.s32 %s40, %s47
      %p70 = scmp.eq.s32.totalorder %s69, 0
      %s72 = sadd.s32 %s71, 1
      %s73 = scalar_select %p70, %s71, %s72
      %p76 = pneg %p70
      %p77 = scmp.eq.s32.totalorder %s40, 1
      %p78 = por %p76, %p77
      %p79 = scmp.ne.s32.totalorder %s71, %s74
      %p80 = scmp.eq.s32.totalorder %s40, 0
      %p81 = por %p79, %p80
      %p82 = scmp.ne.s32.totalorder %s71, %s74
      %p83 = scmp.eq.s32.totalorder %s45, 1
      %p84 = por %p82, %p83
      %p85 = scmp.ne.s32.totalorder %s74, %s75
      %p86 = scmp.eq.s32.totalorder %s45, 0
      %p87 = por %p85, %p86
      %p88 = scmp.ne.s32.totalorder %s74, %s75
      %p89 = scmp.eq.s32.totalorder %s46, 1
      %p90 = por %p88, %p89
      %p92 = scmp.ne.s32.totalorder %s75, %s91
      %p93 = scmp.eq.s32.totalorder %s46, 0
      %p94 = por %p92, %p93
      %s95 = ssub.s32 %s40, %s47
      %p96 = scmp.eq.s32.totalorder %s95, 0
      %s98 = sadd.s32 %s97, 1
      %s99 = scalar_select %p96, %s97, %s98
      %p102 = pneg %p96
      %p103 = scmp.eq.s32.totalorder %s40, 1
      %p104 = por %p102, %p103
      %p105 = scmp.ne.s32.totalorder %s97, %s100
      %p106 = scmp.eq.s32.totalorder %s40, 0
      %p107 = por %p105, %p106
      %p108 = scmp.ne.s32.totalorder %s97, %s100
      %p109 = scmp.eq.s32.totalorder %s45, 1
      %p110 = por %p108, %p109
      %p111 = scmp.ne.s32.totalorder %s100, %s101
      %p112 = scmp.eq.s32.totalorder %s45, 0
      %p113 = por %p111, %p112
      %p114 = scmp.ne.s32.totalorder %s100, %s101
      %p115 = scmp.eq.s32.totalorder %s46, 1
      %p116 = por %p114, %p115
      %p118 = scmp.ne.s32.totalorder %s101, %s117
      %p119 = scmp.eq.s32.totalorder %s46, 0
      %p120 = por %p118, %p119
      %s121 = ssub.s32 %s40, %s47
      %p122 = scmp.eq.s32.totalorder %s121, 0
      %s124 = sadd.s32 %s123, 1
      %s125 = scalar_select %p122, %s123, %s124
      %p128 = pneg %p122
      %p129 = scmp.eq.s32.totalorder %s40, 1
      %p130 = por %p128, %p129
      %p131 = scmp.ne.s32.totalorder %s123, %s126
      %p132 = scmp.eq.s32.totalorder %s40, 0
      %p133 = por %p131, %p132
      %p134 = scmp.ne.s32.totalorder %s123, %s126
      %p135 = scmp.eq.s32.totalorder %s45, 1
      %p136 = por %p134, %p135
      %p137 = scmp.ne.s32.totalorder %s126, %s127
      %p138 = scmp.eq.s32.totalorder %s45, 0
      %p139 = por %p137, %p138
      %p140 = scmp.ne.s32.totalorder %s126, %s127
      %p141 = scmp.eq.s32.totalorder %s46, 1
      %p142 = por %p140, %p141
      %p144 = scmp.ne.s32.totalorder %s127, %s143
      %p145 = scmp.eq.s32.totalorder %s46, 0
      %p146 = por %p144, %p145
      %s147 = ssub.s32 %s40, %s47
      %p148 = scmp.eq.s32.totalorder %s147, 0
      %s150 = sadd.s32 %s149, 1
      %s151 = scalar_select %p148, %s149, %s150
      %p154 = pneg %p148
      %p155 = scmp.eq.s32.totalorder %s40, 1
      %p156 = por %p154, %p155
      %p157 = scmp.ne.s32.totalorder %s149, %s152
      %p158 = scmp.eq.s32.totalorder %s40, 0
      %p159 = por %p157, %p158
      %p160 = scmp.ne.s32.totalorder %s149, %s152
      %p161 = scmp.eq.s32.totalorder %s45, 1
      %p162 = por %p160, %p161
      %p163 = scmp.ne.s32.totalorder %s152, %s153
      %p164 = scmp.eq.s32.totalorder %s45, 0
      %p165 = por %p163, %p164
      %p166 = scmp.ne.s32.totalorder %s152, %s153
      %p167 = scmp.eq.s32.totalorder %s46, 1
      %p168 = por %p166, %p167
      %p170 = scmp.ne.s32.totalorder %s153, %s169
      %p171 = scmp.eq.s32.totalorder %s46, 0
      %p172 = por %p170, %p171
      %s173 = ssub.s32 %s40, %s47
      %p174 = scmp.eq.s32.totalorder %s173, 0
      %s176 = sadd.s32 %s175, 1
      %s177 = scalar_select %p174, %s175, %s176
      %p180 = pneg %p174
      %p181 = scmp.eq.s32.totalorder %s40, 1
      %p182 = por %p180, %p181
      %p183 = scmp.ne.s32.totalorder %s175, %s178
      %p184 = scmp.eq.s32.totalorder %s40, 0
      %p185 = por %p183, %p184
      %p186 = scmp.ne.s32.totalorder %s175, %s178
      %p187 = scmp.eq.s32.totalorder %s45, 1
      %p188 = por %p186, %p187
      %p189 = scmp.ne.s32.totalorder %s178, %s179
      %p190 = scmp.eq.s32.totalorder %s45, 0
      %p191 = por %p189, %p190
      %p192 = scmp.ne.s32.totalorder %s178, %s179
      %p193 = scmp.eq.s32.totalorder %s46, 1
      %p194 = por %p192, %p193
      %p196 = scmp.ne.s32.totalorder %s179, %s195
      %p197 = scmp.eq.s32.totalorder %s46, 0
      %p198 = por %p196, %p197
      %s199 = ssub.s32 %s40, %s47
      %p200 = scmp.eq.s32.totalorder %s199, 0
      %s202 = sadd.s32 %s201, 1
      %s203 = scalar_select %p200, %s201, %s202
      %p206 = pneg %p200
      %p207 = scmp.eq.s32.totalorder %s40, 1
      %p208 = por %p206, %p207
      %p209 = scmp.ne.s32.totalorder %s201, %s204
      %p210 = scmp.eq.s32.totalorder %s40, 0
      %p211 = por %p209, %p210
      %p212 = scmp.ne.s32.totalorder %s201, %s204
      %p213 = scmp.eq.s32.totalorder %s45, 1
      %p214 = por %p212, %p213
      %p215 = scmp.ne.s32.totalorder %s204, %s205
      %p216 = scmp.eq.s32.totalorder %s45, 0
      %p217 = por %p215, %p216
      %p218 = scmp.ne.s32.totalorder %s204, %s205
      %p219 = scmp.eq.s32.totalorder %s46, 1
      %p220 = por %p218, %p219
      %p222 = scmp.ne.s32.totalorder %s205, %s221
      %p223 = scmp.eq.s32.totalorder %s46, 0
      %p224 = por %p222, %p223
      %s225 = ssub.s32 %s40, %s47
      %p226 = scmp.eq.s32.totalorder %s225, 0
      %s228 = sadd.s32 %s227, 1
      %s229 = scalar_select %p226, %s227, %s228
      %p232 = pneg %p226
      %p233 = scmp.eq.s32.totalorder %s40, 1
      %p234 = por %p232, %p233
      %p235 = scmp.ne.s32.totalorder %s227, %s230
      %p236 = scmp.eq.s32.totalorder %s40, 0
      %p237 = por %p235, %p236
      %p238 = scmp.ne.s32.totalorder %s227, %s230
      %p239 = scmp.eq.s32.totalorder %s45, 1
      %p240 = por %p238, %p239
      %p241 = scmp.ne.s32.totalorder %s230, %s231
      %p242 = scmp.eq.s32.totalorder %s45, 0
      %p243 = por %p241, %p242
      %p244 = scmp.ne.s32.totalorder %s230, %s231
      %p245 = scmp.eq.s32.totalorder %s46, 1
      %p246 = por %p244, %p245
      %p248 = scmp.ne.s32.totalorder %s231, %s247
      %p249 = scmp.eq.s32.totalorder %s46, 0
      %p250 = por %p248, %p249
      %s251 = ssub.s32 %s40, %s47
      %p252 = scmp.eq.s32.totalorder %s251, 0
      %s254 = sadd.s32 %s253, 1
      %s255 = scalar_select %p252, %s253, %s254
      %p258 = pneg %p252
      %p259 = scmp.eq.s32.totalorder %s40, 1
      %p260 = por %p258, %p259
      %p261 = scmp.ne.s32.totalorder %s253, %s256
      %p262 = scmp.eq.s32.totalorder %s40, 0
      %p263 = por %p261, %p262
      %p264 = scmp.ne.s32.totalorder %s253, %s256
      %p265 = scmp.eq.s32.totalorder %s45, 1
      %p266 = por %p264, %p265
      %p267 = scmp.ne.s32.totalorder %s256, %s257
      %p268 = scmp.eq.s32.totalorder %s45, 0
      %p269 = por %p267, %p268
      %p270 = scmp.ne.s32.totalorder %s256, %s257
      %p271 = scmp.eq.s32.totalorder %s46, 1
      %p272 = por %p270, %p271
      %p274 = scmp.ne.s32.totalorder %s257, %s273
      %p275 = scmp.eq.s32.totalorder %s46, 0
      %p276 = por %p274, %p275
      %s277 = ssub.s32 %s40, %s47
      %p278 = scmp.eq.s32.totalorder %s277, 0
      %s280 = sadd.s32 %s279, 1
      %s281 = scalar_select %p278, %s279, %s280
      %p284 = pneg %p278
      %p285 = scmp.eq.s32.totalorder %s40, 1
      %p286 = por %p284, %p285
      %p287 = scmp.ne.s32.totalorder %s279, %s282
      %p288 = scmp.eq.s32.totalorder %s40, 0
      %p289 = por %p287, %p288
      %p290 = scmp.ne.s32.totalorder %s279, %s282
      %p291 = scmp.eq.s32.totalorder %s45, 1
      %p292 = por %p290, %p291
      %p293 = scmp.ne.s32.totalorder %s282, %s283
      %p294 = scmp.eq.s32.totalorder %s45, 0
      %p295 = por %p293, %p294
      %p296 = scmp.ne.s32.totalorder %s282, %s283
      %p297 = scmp.eq.s32.totalorder %s46, 1
      %p298 = por %p296, %p297
      %p300 = scmp.ne.s32.totalorder %s283, %s299
      %p301 = scmp.eq.s32.totalorder %s46, 0
      %p302 = por %p300, %p301
      %s303 = ssub.s32 %s40, %s47
      %p304 = scmp.eq.s32.totalorder %s303, 0
      %s306 = sadd.s32 %s305, 1
      %s307 = scalar_select %p304, %s305, %s306
      %p310 = pneg %p304
      %p311 = scmp.eq.s32.totalorder %s40, 1
      %p312 = por %p310, %p311
      %p313 = scmp.ne.s32.totalorder %s305, %s308
      %p314 = scmp.eq.s32.totalorder %s40, 0
      %p315 = por %p313, %p314
      %p316 = scmp.ne.s32.totalorder %s305, %s308
      %p317 = scmp.eq.s32.totalorder %s45, 1
      %p318 = por %p316, %p317
      %p319 = scmp.ne.s32.totalorder %s308, %s309
      %p320 = scmp.eq.s32.totalorder %s45, 0
      %p321 = por %p319, %p320
      %p322 = scmp.ne.s32.totalorder %s308, %s309
      %p323 = scmp.eq.s32.totalorder %s46, 1
      %p324 = por %p322, %p323
      %p326 = scmp.ne.s32.totalorder %s309, %s325
      %p327 = scmp.eq.s32.totalorder %s46, 0
      %p328 = por %p326, %p327
      %s329 = ssub.s32 %s40, %s47
      %p330 = scmp.eq.s32.totalorder %s329, 0
      %s332 = sadd.s32 %s331, 1
      %s333 = scalar_select %p330, %s331, %s332
      %p336 = pneg %p330
      %p337 = scmp.eq.s32.totalorder %s40, 1
      %p338 = por %p336, %p337
      %p339 = scmp.ne.s32.totalorder %s331, %s334
      %p340 = scmp.eq.s32.totalorder %s40, 0
      %p341 = por %p339, %p340
      %p342 = scmp.ne.s32.totalorder %s331, %s334
      %p343 = scmp.eq.s32.totalorder %s45, 1
      %p344 = por %p342, %p343
      %p345 = scmp.ne.s32.totalorder %s334, %s335
      %p346 = scmp.eq.s32.totalorder %s45, 0
      %p347 = por %p345, %p346
      %p348 = scmp.ne.s32.totalorder %s334, %s335
      %p349 = scmp.eq.s32.totalorder %s46, 1
      %p350 = por %p348, %p349
      %p352 = scmp.ne.s32.totalorder %s335, %s351
      %p353 = scmp.eq.s32.totalorder %s46, 0
      %p354 = por %p352, %p353
      %s355 = ssub.s32 %s40, %s47
      %p356 = scmp.eq.s32.totalorder %s355, 0
      %s358 = sadd.s32 %s357, 1
      %s359 = scalar_select %p356, %s357, %s358
      %p362 = pneg %p356
      %p363 = scmp.eq.s32.totalorder %s40, 1
      %p364 = por %p362, %p363
      %p365 = scmp.ne.s32.totalorder %s357, %s360
      %p366 = scmp.eq.s32.totalorder %s40, 0
      %p367 = por %p365, %p366
      %p368 = scmp.ne.s32.totalorder %s357, %s360
      %p369 = scmp.eq.s32.totalorder %s45, 1
      %p370 = por %p368, %p369
      %p371 = scmp.ne.s32.totalorder %s360, %s361
      %p372 = scmp.eq.s32.totalorder %s45, 0
      %p373 = por %p371, %p372
      %p374 = scmp.ne.s32.totalorder %s360, %s361
      %p375 = scmp.eq.s32.totalorder %s46, 1
      %p376 = por %p374, %p375
      %p378 = scmp.ne.s32.totalorder %s361, %s377
      %p379 = scmp.eq.s32.totalorder %s46, 0
      %p380 = por %p378, %p379
      %s382 = sadd.s32 %s381, 1
      %p385 = scmp.eq.s32.totalorder %s40, 1
      %p386 = scmp.ne.s32.totalorder %s381, %s383
      %p387 = scmp.eq.s32.totalorder %s40, 0
      %p388 = por %p386, %p387
      %p389 = scmp.ne.s32.totalorder %s381, %s383
      %p390 = scmp.eq.s32.totalorder %s45, 1
      %p391 = por %p389, %p390
      %p392 = scmp.ne.s32.totalorder %s383, %s384
      %p393 = scmp.eq.s32.totalorder %s45, 0
      %p394 = por %p392, %p393
      %p395 = scmp.ne.s32.totalorder %s383, %s384
      %p396 = scmp.eq.s32.totalorder %s46, 1
      %p397 = por %p395, %p396
      %p399 = scmp.ne.s32.totalorder %s384, %s398
      %p400 = scmp.eq.s32.totalorder %s46, 0
      %p401 = por %p399, %p400
      %s403 = sadd.s32 %s402, 1
      %p406 = scmp.eq.s32.totalorder %s40, 1
      %p407 = scmp.ne.s32.totalorder %s402, %s404
      %p408 = scmp.eq.s32.totalorder %s40, 0
      %p409 = por %p407, %p408
      %p410 = scmp.ne.s32.totalorder %s402, %s404
      %p411 = scmp.eq.s32.totalorder %s45, 1
      %p412 = por %p410, %p411
      %p413 = scmp.ne.s32.totalorder %s404, %s405
      %p414 = scmp.eq.s32.totalorder %s45, 0
      %p415 = por %p413, %p414
      %p416 = scmp.ne.s32.totalorder %s404, %s405
      %p417 = scmp.eq.s32.totalorder %s46, 1
      %p418 = por %p416, %p417
      %p420 = scmp.ne.s32.totalorder %s405, %s419
      %p421 = scmp.eq.s32.totalorder %s46, 0
      %p422 = por %p420, %p421
      %s424 = sadd.s32 %s423, 1
      %p427 = scmp.eq.s32.totalorder %s40, 1
      %p428 = scmp.ne.s32.totalorder %s423, %s425
      %p429 = scmp.eq.s32.totalorder %s40, 0
      %p430 = por %p428, %p429
      %p431 = scmp.ne.s32.totalorder %s423, %s425
      %p432 = scmp.eq.s32.totalorder %s45, 1
      %p433 = por %p431, %p432
      %p434 = scmp.ne.s32.totalorder %s425, %s426
      %p435 = scmp.eq.s32.totalorder %s45, 0
      %p436 = por %p434, %p435
      %p437 = scmp.ne.s32.totalorder %s425, %s426
      %p438 = scmp.eq.s32.totalorder %s46, 1
      %p439 = por %p437, %p438
      %p441 = scmp.ne.s32.totalorder %s426, %s440
      %p442 = scmp.eq.s32.totalorder %s46, 0
      %p443 = por %p441, %p442
      %s444 = ssub.s32 %s40, %s47
      %p445 = scmp.eq.s32.totalorder %s444, 0
      %s447 = sadd.s32 %s446, 1
      %s448 = scalar_select %p445, %s446, %s447
      %p451 = pneg %p445
      %p452 = scmp.eq.s32.totalorder %s40, 1
      %p453 = por %p451, %p452
      %p454 = scmp.ne.s32.totalorder %s446, %s449
      %p455 = scmp.eq.s32.totalorder %s40, 0
      %p456 = por %p454, %p455
      %p457 = scmp.ne.s32.totalorder %s446, %s449
      %p458 = scmp.eq.s32.totalorder %s45, 1
      %p459 = por %p457, %p458
      %p460 = scmp.ne.s32.totalorder %s449, %s450
      %p461 = scmp.eq.s32.totalorder %s45, 0
      %p462 = por %p460, %p461
      %p463 = scmp.ne.s32.totalorder %s449, %s450
      %p464 = scmp.eq.s32.totalorder %s46, 1
      %p465 = por %p463, %p464
      %p467 = scmp.ne.s32.totalorder %s450, %s466
      %p468 = scmp.eq.s32.totalorder %s46, 0
      %p469 = por %p467, %p468
      %p470 = scmp.le.s32.totalorder 1, %s40
      %p471 = scmp.lt.s32.totalorder %s40, 3
      %p472 = pnand %p470, %p471
      %p473 = pneg %p472
      // Predicated region
      $region9: #{tpu_custom_call.1} parent=5 // pred_check
        _
      $region10: #{tpu_custom_call.1} parent=5 // pred_check_branch
        %475 = sbr.rel (%p472) target = $region12
      $region11: #{tpu_custom_call.1} parent=5 // pred_region
        %s476 = ssub.s32 %s40, 1
        // Predicated region
        $region13: #{tpu_custom_call.1} parent=11 // pred_check
          %p477 = pneg %p61
        $region14: #{tpu_custom_call.1} parent=11 // pred_check_branch
          %479 = sbr.rel (%p477) target = $region16
        $region15: #{tpu_custom_call.1} parent=11 // pred_region
          %481 = vsyncadd [#allocation3], 0
          %s482 = sshll.u32 %s0, 4
          %s483 = int_to_ptr.hbm [resolvable:$true] %s482
          %s484 = sshll.u32 [#allocation2], 4
          %s485 = int_to_ptr.vmem [resolvable:$true] %s484
          %490 = dma.hbm_to_vmem [thread:$0]  %s483, 256, %s485, [#allocation3], 128, 128, 8
        $region16: #{tpu_custom_call.1} parent=11 // pred_fallthru
          _
        // Predicated region
        $region17: #{tpu_custom_call.1} parent=11 // pred_check
          %p491 = pneg %p394
        $region18: #{tpu_custom_call.1} parent=11 // pred_check_branch
          %493 = sbr.rel (%p491) target = $region20
        $region19: #{tpu_custom_call.1} parent=11 // pred_region
          _
        $region20: #{tpu_custom_call.1} parent=11 // pred_fallthru
          _
        // Predicated region
        $region21: #{tpu_custom_call.1} parent=11 // pred_check
          %p494 = pneg %p415
        $region22: #{tpu_custom_call.1} parent=11 // pred_check_branch
          %496 = sbr.rel (%p494) target = $region24
        $region23: #{tpu_custom_call.1} parent=11 // pred_region
          _
        $region24: #{tpu_custom_call.1} parent=11 // pred_fallthru
          _
      $region12: #{tpu_custom_call.1} parent=5 // pred_fallthru
        _
      %p497 = scmp.lt.s32.totalorder %s40, 2
      // Predicated region
      $region25: #{tpu_custom_call.1} parent=5 // pred_check
        %p498 = pneg %p497
      $region26: #{tpu_custom_call.1} parent=5 // pred_check_branch
        %500 = sbr.rel (%p498) target = $region28
      $region27: #{tpu_custom_call.1} parent=5 // pred_region
        // Predicated region
        $region29: #{tpu_custom_call.1} parent=27 // pred_check
          %p501 = pneg %p81
        $region30: #{tpu_custom_call.1} parent=27 // pred_check_branch
          %503 = sbr.rel (%p501) target = $region32
        $region31: #{tpu_custom_call.1} parent=27 // pred_region
          %s504 = sand.u32 %s40, 1
          %s505 = scalar_lea.sflag [#allocation6], %s504
          %s506 = sand.u32 %s71, 1
          %s507 = smul.addr %s506, 192
          %s508 = scalar_lea.vmem [#allocation5], %s507
          %510 = vsyncadd %s505, 0
          %s511 = smul.addr %s40, 48
          %s512 = smul.addr %s511, 4
          %s513 = scalar_lea.hbm %s1, %s512
          %s514 = sshll.u32 %s513, 4
          %s515 = int_to_ptr.hbm [resolvable:$true] %s514
          %s516 = sshll.u32 %s508, 4
          %s517 = int_to_ptr.vmem [resolvable:$true] %s516
          %522 = dma.hbm_to_vmem [thread:$0]  %s515, 3072, %s517, %s505, 192, 192, 12
        $region32: #{tpu_custom_call.1} parent=27 // pred_fallthru
          _
        // Predicated region
        $region33: #{tpu_custom_call.1} parent=27 // pred_check
          %p523 = pneg %p107
        $region34: #{tpu_custom_call.1} parent=27 // pred_check_branch
          %525 = sbr.rel (%p523) target = $region36
        $region35: #{tpu_custom_call.1} parent=27 // pred_region
          %s526 = sand.u32 %s40, 1
          %s527 = scalar_lea.sflag [#allocation6], %s526
          %s528 = sand.u32 %s97, 1
          %s529 = smul.addr %s528, 3
          %s530 = scalar_lea.vmem [#allocation7], %s529
          %532 = vsyncadd %s527, 0
          %s533 = smul.addr %s40, 3
          %s534 = scalar_lea.hbm %s2, %s533
          %s536 = sshll.u32 %s534, 4
          %s537 = int_to_ptr.hbm [resolvable:$true] %s536
          %s538 = sshll.u32 %s530, 4
          %s539 = int_to_ptr.vmem [resolvable:$true] %s538
          %541 = dma.hbm_to_vmem [thread:$0]  %s537, 48, %s539, %s527
        $region36: #{tpu_custom_call.1} parent=27 // pred_fallthru
          _
        // Predicated region
        $region37: #{tpu_custom_call.1} parent=27 // pred_check
          %p542 = pneg %p133
        $region38: #{tpu_custom_call.1} parent=27 // pred_check_branch
          %544 = sbr.rel (%p542) target = $region40
        $region39: #{tpu_custom_call.1} parent=27 // pred_region
          %s545 = sand.u32 %s40, 1
          %s546 = scalar_lea.sflag [#allocation9], %s545
          %s547 = sand.u32 %s123, 1
          %s548 = smul.addr %s547, 64
          %s549 = scalar_lea.vmem [#allocation8], %s548
          %551 = vsyncadd %s546, 0
          %s552 = smul.addr %s40, 16
          %s553 = smul.addr %s552, 4
          %s554 = scalar_lea.hbm %s3, %s553
          %s555 = sshll.u32 %s554, 4
          %s556 = int_to_ptr.hbm [resolvable:$true] %s555
          %s557 = sshll.u32 %s549, 4
          %s558 = int_to_ptr.vmem [resolvable:$true] %s557
          %563 = dma.hbm_to_vmem [thread:$0]  %s556, 1024, %s558, %s546, 64, 64, 4
        $region40: #{tpu_custom_call.1} parent=27 // pred_fallthru
          _
        // Predicated region
        $region41: #{tpu_custom_call.1} parent=27 // pred_check
          %p564 = pneg %p159
        $region42: #{tpu_custom_call.1} parent=27 // pred_check_branch
          %566 = sbr.rel (%p564) target = $region44
        $region43: #{tpu_custom_call.1} parent=27 // pred_region
          %p567 = scmp.lt.s32.totalorder %s40, 1
          %s568 = scalar_select %p567, %s40, 1
          %s569 = scalar_lea.vmem %s4, %s568
        $region44: #{tpu_custom_call.1} parent=27 // pred_fallthru
          _
        // Predicated region
        $region45: #{tpu_custom_call.1} parent=27 // pred_check
          %p570 = pneg %p185
        $region46: #{tpu_custom_call.1} parent=27 // pred_check_branch
          %572 = sbr.rel (%p570) target = $region48
        $region47: #{tpu_custom_call.1} parent=27 // pred_region
          %p573 = scmp.lt.s32.totalorder %s40, 1
          %s574 = scalar_select %p573, %s40, 1
          %s575 = scalar_lea.vmem %s5, %s574
        $region48: #{tpu_custom_call.1} parent=27 // pred_fallthru
          _
        // Predicated region
        $region49: #{tpu_custom_call.1} parent=27 // pred_check
          %p576 = pneg %p211
        $region50: #{tpu_custom_call.1} parent=27 // pred_check_branch
          %578 = sbr.rel (%p576) target = $region52
        $region51: #{tpu_custom_call.1} parent=27 // pred_region
          %s579 = sand.u32 %s40, 1
          %s580 = scalar_lea.sflag [#allocation9], %s579
          %s581 = sand.u32 %s201, 1
          %s582 = scalar_lea.vmem [#allocation10], %s581
          %584 = vsyncadd %s580, 0
          %s585 = scalar_lea.hbm %s6, %s40
          %s587 = sshll.u32 %s585, 4
          %s588 = int_to_ptr.hbm [resolvable:$true] %s587
          %s589 = sshll.u32 %s582, 4
          %s590 = int_to_ptr.vmem [resolvable:$true] %s589
          %592 = dma.hbm_to_vmem [thread:$0]  %s588, 16, %s590, %s580
        $region52: #{tpu_custom_call.1} parent=27 // pred_fallthru
          _
        // Predicated region
        $region53: #{tpu_custom_call.1} parent=27 // pred_check
          %p593 = pneg %p237
        $region54: #{tpu_custom_call.1} parent=27 // pred_check_branch
          %595 = sbr.rel (%p593) target = $region56
        $region55: #{tpu_custom_call.1} parent=27 // pred_region
          %s596 = sand.u32 %s40, 1
          %s597 = scalar_lea.sflag [#allocation12], %s596
          %s598 = sand.u32 %s227, 1
          %s599 = smul.addr %s598, 64
          %s600 = scalar_lea.vmem [#allocation11], %s599
          %602 = vsyncadd %s597, 0
          %s603 = smul.addr %s40, 16
          %s604 = smul.addr %s603, 4
          %s605 = scalar_lea.hbm %s7, %s604
          %s606 = sshll.u32 %s605, 4
          %s607 = int_to_ptr.hbm [resolvable:$true] %s606
          %s608 = sshll.u32 %s600, 4
          %s609 = int_to_ptr.vmem [resolvable:$true] %s608
          %614 = dma.hbm_to_vmem [thread:$0]  %s607, 1024, %s609, %s597, 64, 64, 4
        $region56: #{tpu_custom_call.1} parent=27 // pred_fallthru
          _
        // Predicated region
        $region57: #{tpu_custom_call.1} parent=27 // pred_check
          %p615 = pneg %p263
        $region58: #{tpu_custom_call.1} parent=27 // pred_check_branch
          %617 = sbr.rel (%p615) target = $region60
        $region59: #{tpu_custom_call.1} parent=27 // pred_region
          %p618 = scmp.lt.s32.totalorder %s40, 1
          %s619 = scalar_select %p618, %s40, 1
          %s620 = scalar_lea.vmem %s8, %s619
        $region60: #{tpu_custom_call.1} parent=27 // pred_fallthru
          _
        // Predicated region
        $region61: #{tpu_custom_call.1} parent=27 // pred_check
          %p621 = pneg %p289
        $region62: #{tpu_custom_call.1} parent=27 // pred_check_branch
          %623 = sbr.rel (%p621) target = $region64
        $region63: #{tpu_custom_call.1} parent=27 // pred_region
          %s624 = sand.u32 %s40, 1
          %s625 = scalar_lea.sflag [#allocation12], %s624
          %s626 = sand.u32 %s279, 1
          %s627 = smul.addr %s626, 64
          %s628 = scalar_lea.vmem [#allocation13], %s627
          %630 = vsyncadd %s625, 0
          %s631 = smul.addr %s40, 16
          %s632 = smul.addr %s631, 4
          %s633 = scalar_lea.hbm %s9, %s632
          %s634 = sshll.u32 %s633, 4
          %s635 = int_to_ptr.hbm [resolvable:$true] %s634
          %s636 = sshll.u32 %s628, 4
          %s637 = int_to_ptr.vmem [resolvable:$true] %s636
          %642 = dma.hbm_to_vmem [thread:$0]  %s635, 1024, %s637, %s625, 64, 64, 4
        $region64: #{tpu_custom_call.1} parent=27 // pred_fallthru
          _
        // Predicated region
        $region65: #{tpu_custom_call.1} parent=27 // pred_check
          %p643 = pneg %p315
        $region66: #{tpu_custom_call.1} parent=27 // pred_check_branch
          %645 = sbr.rel (%p643) target = $region68
        $region67: #{tpu_custom_call.1} parent=27 // pred_region
          %p646 = scmp.lt.s32.totalorder %s40, 1
          %s647 = scalar_select %p646, %s40, 1
          %s648 = scalar_lea.vmem %s10, %s647
        $region68: #{tpu_custom_call.1} parent=27 // pred_fallthru
          _
        // Predicated region
        $region69: #{tpu_custom_call.1} parent=27 // pred_check
          %p649 = pneg %p341
        $region70: #{tpu_custom_call.1} parent=27 // pred_check_branch
          %651 = sbr.rel (%p649) target = $region72
        $region71: #{tpu_custom_call.1} parent=27 // pred_region
          %p652 = scmp.lt.s32.totalorder %s40, 1
          %s653 = scalar_select %p652, %s40, 1
          %s654 = scalar_lea.vmem %s11, %s653
        $region72: #{tpu_custom_call.1} parent=27 // pred_fallthru
          _
        // Predicated region
        $region73: #{tpu_custom_call.1} parent=27 // pred_check
          %p655 = pneg %p367
        $region74: #{tpu_custom_call.1} parent=27 // pred_check_branch
          %657 = sbr.rel (%p655) target = $region76
        $region75: #{tpu_custom_call.1} parent=27 // pred_region
          %s658 = sand.u32 %s357, 1
          %s659 = scalar_lea.sflag [#allocation15], %s658
          %s660 = sand.u32 %s357, 1
          %s661 = scalar_lea.vmem [#allocation14], %s660
          %663 = vsyncadd %s659, 0
          %s664 = scalar_lea.hbm %s12, %s40
          %s666 = sshll.u32 %s664, 4
          %s667 = int_to_ptr.hbm [resolvable:$true] %s666
          %s668 = sshll.u32 %s661, 4
          %s669 = int_to_ptr.vmem [resolvable:$true] %s668
          %671 = dma.hbm_to_vmem [thread:$0]  %s667, 16, %s669, %s659
        $region76: #{tpu_custom_call.1} parent=27 // pred_fallthru
          _
      $region28: #{tpu_custom_call.1} parent=5 // pred_fallthru
        _
      %p672 = scmp.le.s32.totalorder 1, %s40
      %p673 = scmp.lt.s32.totalorder %s40, 3
      %p674 = pnand %p672, %p673
      %p675 = pneg %p674
      // Predicated region
      $region77: #{tpu_custom_call.1} parent=5 // pred_check
        _
      $region78: #{tpu_custom_call.1} parent=5 // pred_check_branch
        %677 = sbr.rel (%p674) target = $region80
      $region79: #{tpu_custom_call.1} parent=5 // pred_region
        %s678 = ssub.s32 %s40, 1
        // Predicated region
        $region81: #{tpu_custom_call.1} parent=79 // pred_check
          %p679 = pneg %p61
        $region82: #{tpu_custom_call.1} parent=79 // pred_check_branch
          %681 = sbr.rel (%p679) target = $region84
        $region83: #{tpu_custom_call.1} parent=79 // pred_region
          %683 = dma.done [#allocation3], 256
        $region84: #{tpu_custom_call.1} parent=79 // pred_fallthru
          _
        %s684 = sand.u32 %s45, 1
        %s685 = scalar_lea.sflag [#allocation6], %s684
        %s686 = sand.u32 %s74, 1
        %s687 = smul.addr %s686, 192
        %s688 = scalar_lea.vmem [#allocation5], %s687
        // Predicated region
        $region85: #{tpu_custom_call.1} parent=79 // pred_check
          %p689 = pneg %p87
        $region86: #{tpu_custom_call.1} parent=79 // pred_check_branch
          %691 = sbr.rel (%p689) target = $region88
        $region87: #{tpu_custom_call.1} parent=79 // pred_region
          %693 = dma.done %s685, 3072
        $region88: #{tpu_custom_call.1} parent=79 // pred_fallthru
          _
        %s694 = sand.u32 %s45, 1
        %s695 = scalar_lea.sflag [#allocation6], %s694
        %s696 = sand.u32 %s100, 1
        %s697 = smul.addr %s696, 3
        %s698 = scalar_lea.vmem [#allocation7], %s697
        // Predicated region
        $region89: #{tpu_custom_call.1} parent=79 // pred_check
          %p699 = pneg %p113
        $region90: #{tpu_custom_call.1} parent=79 // pred_check_branch
          %701 = sbr.rel (%p699) target = $region92
        $region91: #{tpu_custom_call.1} parent=79 // pred_region
          %703 = dma.done %s695, 48
        $region92: #{tpu_custom_call.1} parent=79 // pred_fallthru
          _
        %s704 = sand.u32 %s45, 1
        %s705 = scalar_lea.sflag [#allocation9], %s704
        %s706 = sand.u32 %s126, 1
        %s707 = smul.addr %s706, 64
        %s708 = scalar_lea.vmem [#allocation8], %s707
        // Predicated region
        $region93: #{tpu_custom_call.1} parent=79 // pred_check
          %p709 = pneg %p139
        $region94: #{tpu_custom_call.1} parent=79 // pred_check_branch
          %711 = sbr.rel (%p709) target = $region96
        $region95: #{tpu_custom_call.1} parent=79 // pred_region
          %713 = dma.done %s705, 1024
        $region96: #{tpu_custom_call.1} parent=79 // pred_fallthru
          _
        %s714 = sand.u32 %s45, 1
        %s715 = scalar_lea.sflag [#allocation9], %s714
        %s716 = sand.u32 %s204, 1
        %s717 = scalar_lea.vmem [#allocation10], %s716
        // Predicated region
        $region97: #{tpu_custom_call.1} parent=79 // pred_check
          %p718 = pneg %p217
        $region98: #{tpu_custom_call.1} parent=79 // pred_check_branch
          %720 = sbr.rel (%p718) target = $region100
        $region99: #{tpu_custom_call.1} parent=79 // pred_region
          %722 = dma.done %s715, 16
        $region100: #{tpu_custom_call.1} parent=79 // pred_fallthru
          _
        %s723 = sand.u32 %s45, 1
        %s724 = scalar_lea.sflag [#allocation12], %s723
        %s725 = sand.u32 %s230, 1
        %s726 = smul.addr %s725, 64
        %s727 = scalar_lea.vmem [#allocation11], %s726
        // Predicated region
        $region101: #{tpu_custom_call.1} parent=79 // pred_check
          %p728 = pneg %p243
        $region102: #{tpu_custom_call.1} parent=79 // pred_check_branch
          %730 = sbr.rel (%p728) target = $region104
        $region103: #{tpu_custom_call.1} parent=79 // pred_region
          %732 = dma.done %s724, 1024
        $region104: #{tpu_custom_call.1} parent=79 // pred_fallthru
          _
        %s733 = sand.u32 %s45, 1
        %s734 = scalar_lea.sflag [#allocation12], %s733
        %s735 = sand.u32 %s282, 1
        %s736 = smul.addr %s735, 64
        %s737 = scalar_lea.vmem [#allocation13], %s736
        // Predicated region
        $region105: #{tpu_custom_call.1} parent=79 // pred_check
          %p738 = pneg %p295
        $region106: #{tpu_custom_call.1} parent=79 // pred_check_branch
          %740 = sbr.rel (%p738) target = $region108
        $region107: #{tpu_custom_call.1} parent=79 // pred_region
          %742 = dma.done %s734, 1024
        $region108: #{tpu_custom_call.1} parent=79 // pred_fallthru
          _
        %s743 = sand.u32 %s360, 1
        %s744 = scalar_lea.sflag [#allocation15], %s743
        %s745 = sand.u32 %s360, 1
        %s746 = scalar_lea.vmem [#allocation14], %s745
        // Predicated region
        $region109: #{tpu_custom_call.1} parent=79 // pred_check
          %p747 = pneg %p373
        $region110: #{tpu_custom_call.1} parent=79 // pred_check_branch
          %749 = sbr.rel (%p747) target = $region112
        $region111: #{tpu_custom_call.1} parent=79 // pred_region
          %751 = dma.done %s744, 16
        $region112: #{tpu_custom_call.1} parent=79 // pred_fallthru
          _
        %p752 = pneg %p61
        %p753 = pneg %p58
        %s754 = sand.u32 %s45, 1
        %s755 = scalar_lea.sflag [#allocation6], %s754
        %s756 = sand.u32 %s74, 1
        %s757 = smul.addr %s756, 192
        %s758 = scalar_lea.vmem [#allocation5], %s757
        %p759 = pneg %p87
        %p760 = pneg %p84
        %s761 = sand.u32 %s45, 1
        %s762 = scalar_lea.sflag [#allocation6], %s761
        %s763 = sand.u32 %s100, 1
        %s764 = smul.addr %s763, 3
        %s765 = scalar_lea.vmem [#allocation7], %s764
        %p766 = pneg %p113
        %p767 = pneg %p110
        %s768 = sand.u32 %s45, 1
        %s769 = scalar_lea.sflag [#allocation9], %s768
        %s770 = sand.u32 %s126, 1
        %s771 = smul.addr %s770, 64
        %s772 = scalar_lea.vmem [#allocation8], %s771
        %p773 = pneg %p139
        %p774 = pneg %p136
        %p775 = scmp.lt.s32.totalorder %s45, 1
        %s776 = scalar_select %p775, %s45, 1
        %s777 = scalar_lea.vmem %s4, %s776
        %p778 = pneg %p165
        %p779 = pneg %p162
        %p780 = scmp.lt.s32.totalorder %s45, 1
        %s781 = scalar_select %p780, %s45, 1
        %s782 = scalar_lea.vmem %s5, %s781
        %p783 = pneg %p191
        %p784 = pneg %p188
        %s785 = sand.u32 %s45, 1
        %s786 = scalar_lea.sflag [#allocation9], %s785
        %s787 = sand.u32 %s204, 1
        %s788 = scalar_lea.vmem [#allocation10], %s787
        %p789 = pneg %p217
        %p790 = pneg %p214
        %s791 = sand.u32 %s45, 1
        %s792 = scalar_lea.sflag [#allocation12], %s791
        %s793 = sand.u32 %s230, 1
        %s794 = smul.addr %s793, 64
        %s795 = scalar_lea.vmem [#allocation11], %s794
        %p796 = pneg %p243
        %p797 = pneg %p240
        %p798 = scmp.lt.s32.totalorder %s45, 1
        %s799 = scalar_select %p798, %s45, 1
        %s800 = scalar_lea.vmem %s8, %s799
        %p801 = pneg %p269
        %p802 = pneg %p266
        %s803 = sand.u32 %s45, 1
        %s804 = scalar_lea.sflag [#allocation12], %s803
        %s805 = sand.u32 %s282, 1
        %s806 = smul.addr %s805, 64
        %s807 = scalar_lea.vmem [#allocation13], %s806
        %p808 = pneg %p295
        %p809 = pneg %p292
        %p810 = scmp.lt.s32.totalorder %s45, 1
        %s811 = scalar_select %p810, %s45, 1
        %s812 = scalar_lea.vmem %s10, %s811
        %p813 = pneg %p321
        %p814 = pneg %p318
        %p815 = scmp.lt.s32.totalorder %s45, 1
        %s816 = scalar_select %p815, %s45, 1
        %s817 = scalar_lea.vmem %s11, %s816
        %p818 = pneg %p347
        %p819 = pneg %p344
        %s820 = sand.u32 %s360, 1
        %s821 = scalar_lea.sflag [#allocation15], %s820
        %s822 = sand.u32 %s360, 1
        %s823 = scalar_lea.vmem [#allocation14], %s822
        %p824 = pneg %p373
        %p825 = pneg %p370
        %p826 = pneg %p394
        %p827 = pneg %p391
        %p828 = pneg %p415
        %p829 = pneg %p412
        %p830 = pneg %p436
        %p831 = pneg %p433
        %p832 = pneg %p462
        %p833 = pneg %p459
        %s834 = sand.u32 %s449, 1
        %s835 = scalar_lea.sflag [#allocation18], %s834
        %s836 = sand.u32 %s449, 1
        %s837 = smul.addr %s836, 16
        %s838 = scalar_lea.vmem [#allocation17], %s837
        %p839 = scmp.lt.s32.totalorder %s45, 1
        %s840 = scalar_select %p839, %s45, 1
        %s841 = scalar_lea.vmem %s4, %s840
        %p842 = scmp.lt.s32.totalorder %s45, 1
        %s843 = scalar_select %p842, %s45, 1
        %s844 = scalar_lea.vmem %s5, %s843
        %p845 = scmp.lt.s32.totalorder %s45, 1
        %s846 = scalar_select %p845, %s45, 1
        %s847 = scalar_lea.vmem %s8, %s846
        %p848 = scmp.lt.s32.totalorder %s45, 1
        %s849 = scalar_select %p848, %s45, 1
        %s850 = scalar_lea.vmem %s10, %s849
        %p851 = scmp.lt.s32.totalorder %s45, 1
        %s852 = scalar_select %p851, %s45, 1
        %s853 = scalar_lea.vmem %s11, %s852
        %p855 = scmp.eq.s32.totalorder %s45, 0
        // Predicated region
        $region113: #{tpu_custom_call.1} parent=79 // pred_check
          %p856 = pneg %p855
        $region114: #{tpu_custom_call.1} parent=79 // pred_check_branch
          %858 = sbr.rel (%p856) target = $region116
        $region115: #{tpu_custom_call.1} parent=79 // pred_region
          %v859 = vld [vmem:[#allocation2] sm:$0xff]
          %v860 = vld [vmem:[#allocation2 + $0x8] sm:$0xff]
          %861 = vst [vmem:[#allocation16] sm:$0xff] %v859
          %862 = vst [vmem:[#allocation16 + $0x8] sm:$0xff] %v860
        $region116: #{tpu_custom_call.1} parent=79 // pred_fallthru
          _
        %v863 = vld [vmem:[#allocation16] sm:$0xff]
        %v864 = vld [vmem:[#allocation16 + $0x8] sm:$0xff]
        %v865 = vpack.c.bf16 %v863, %v863
        %v866 = vpack.c.bf16 %v864, %v864
        %v867 = vld [vmem:[%s688] sm:$0xff]
        %v868 = vld [vmem:[%s688 + $0x8] sm:$0xf]
        %v869 = vld [vmem:[%s688 + $0xc] sm:$0xff]
        %v870 = vld [vmem:[%s688 + $0x14] sm:$0xf]
        %v871 = vld [vmem:[%s688 + $0x18] sm:$0xff]
        %v872 = vld [vmem:[%s688 + $0x20] sm:$0xf]
        %v873 = vld [vmem:[%s688 + $0x24] sm:$0xff]
        %v874 = vld [vmem:[%s688 + $0x2c] sm:$0xf]
        %v875 = vld [vmem:[%s688 + $0x30] sm:$0xff]
        %v876 = vld [vmem:[%s688 + $0x38] sm:$0xf]
        %v877 = vld [vmem:[%s688 + $0x3c] sm:$0xff]
        %v878 = vld [vmem:[%s688 + $0x44] sm:$0xf]
        %v879 = vld [vmem:[%s688 + $0x48] sm:$0xff]
        %v880 = vld [vmem:[%s688 + $0x50] sm:$0xf]
        %v881 = vld [vmem:[%s688 + $0x54] sm:$0xff]
        %v882 = vld [vmem:[%s688 + $0x5c] sm:$0xf]
        %v883 = vld [vmem:[%s688 + $0x60] sm:$0xff]
        %v884 = vld [vmem:[%s688 + $0x68] sm:$0xf]
        %v885 = vld [vmem:[%s688 + $0x6c] sm:$0xff]
        %v886 = vld [vmem:[%s688 + $0x74] sm:$0xf]
        %v887 = vld [vmem:[%s688 + $0x78] sm:$0xff]
        %v888 = vld [vmem:[%s688 + $0x80] sm:$0xf]
        %v889 = vld [vmem:[%s688 + $0x84] sm:$0xff]
        %v890 = vld [vmem:[%s688 + $0x8c] sm:$0xf]
        %v891 = vld [vmem:[%s688 + $0x90] sm:$0xff]
        %v892 = vld [vmem:[%s688 + $0x98] sm:$0xf]
        %v893 = vld [vmem:[%s688 + $0x9c] sm:$0xff]
        %v894 = vld [vmem:[%s688 + $0xa4] sm:$0xf]
        %v895 = vld [vmem:[%s688 + $0xa8] sm:$0xff]
        %v896 = vld [vmem:[%s688 + $0xb0] sm:$0xf]
        %v897 = vld [vmem:[%s688 + $0xb4] sm:$0xff]
        %v898 = vld [vmem:[%s688 + $0xbc] sm:$0xf]
        %v899 = vld [vmem:[%s698] sm:$0x7]
        %v901 = vperm.slane %v899, 0
        %v902 = vperm.slane %v899, 1
        %v903 = vperm.slane %v899, 2
        %v909 = vunpack.c.l.b16 %v865
        %v910 = vunpack.c.l.b16 %v866
        %v911 = vpack.c.b16 %v910, %v909
        %v945 = vunpack.c.l.b16 %v867
        %v946 = vunpack.c.h.b16 %v867
        %v947 = vunpack.c.l.b16 %v868
        %v948 = vunpack.c.l.b16 %v869
        %v949 = vunpack.c.h.b16 %v869
        %v950 = vunpack.c.l.b16 %v870
        %v951 = vunpack.c.l.b16 %v871
        %v952 = vunpack.c.h.b16 %v871
        %v953 = vunpack.c.l.b16 %v872
        %v954 = vunpack.c.l.b16 %v873
        %v955 = vunpack.c.h.b16 %v873
        %v956 = vunpack.c.l.b16 %v874
        %v957 = vunpack.c.l.b16 %v875
        %v958 = vunpack.c.h.b16 %v875
        %v959 = vunpack.c.l.b16 %v876
        %v960 = vunpack.c.l.b16 %v877
        %v961 = vunpack.c.h.b16 %v877
        %v962 = vunpack.c.l.b16 %v878
        %v963 = vunpack.c.l.b16 %v879
        %v964 = vunpack.c.h.b16 %v879
        %v965 = vunpack.c.l.b16 %v880
        %v966 = vunpack.c.l.b16 %v881
        %v967 = vunpack.c.h.b16 %v881
        %v968 = vunpack.c.l.b16 %v882
        %v969 = vunpack.c.l.b16 %v883
        %v970 = vunpack.c.h.b16 %v883
        %v971 = vunpack.c.l.b16 %v884
        %v972 = vunpack.c.l.b16 %v885
        %v973 = vunpack.c.h.b16 %v885
        %v974 = vunpack.c.l.b16 %v886
        %v975 = vunpack.c.l.b16 %v887
        %v976 = vunpack.c.h.b16 %v887
        %v977 = vunpack.c.l.b16 %v888
        %v978 = vunpack.c.l.b16 %v889
        %v979 = vunpack.c.h.b16 %v889
        %v980 = vunpack.c.l.b16 %v890
        %v981 = vunpack.c.l.b16 %v891
        %v982 = vunpack.c.h.b16 %v891
        %v983 = vunpack.c.l.b16 %v892
        %v984 = vunpack.c.l.b16 %v893
        %v985 = vunpack.c.h.b16 %v893
        %v986 = vunpack.c.l.b16 %v894
        %v987 = vunpack.c.l.b16 %v895
        %v988 = vunpack.c.h.b16 %v895
        %v989 = vunpack.c.l.b16 %v896
        %v990 = vunpack.c.l.b16 %v897
        %v991 = vunpack.c.h.b16 %v897
        %v992 = vunpack.c.l.b16 %v898
        %v993 = vpack.c.b16 %v948, %v945
        %v994 = vpack.c.b16 %v949, %v946
        %v995 = vpack.c.b16 %v950, %v947
        %v996 = vpack.c.b16 %v954, %v951
        %v997 = vpack.c.b16 %v955, %v952
        %v998 = vpack.c.b16 %v956, %v953
        %v999 = vpack.c.b16 %v960, %v957
        %v1000 = vpack.c.b16 %v961, %v958
        %v1001 = vpack.c.b16 %v962, %v959
        %v1002 = vpack.c.b16 %v966, %v963
        %v1003 = vpack.c.b16 %v967, %v964
        %v1004 = vpack.c.b16 %v968, %v965
        %v1005 = vpack.c.b16 %v972, %v969
        %v1006 = vpack.c.b16 %v973, %v970
        %v1007 = vpack.c.b16 %v974, %v971
        %v1008 = vpack.c.b16 %v978, %v975
        %v1009 = vpack.c.b16 %v979, %v976
        %v1010 = vpack.c.b16 %v980, %v977
        %v1011 = vpack.c.b16 %v984, %v981
        %v1012 = vpack.c.b16 %v985, %v982
        %v1013 = vpack.c.b16 %v986, %v983
        %v1014 = vpack.c.b16 %v990, %v987
        %v1015 = vpack.c.b16 %v991, %v988
        %v1016 = vpack.c.b16 %v992, %v989
        %1041 = vmatpush.bf16.msra.mxu0 %v1014
        %1042 = vmatpush.bf16.msra.mxu0 %v1011
        %1043 = vmatpush.bf16.msra.mxu0 %v1008
        %1044 = vmatpush.bf16.msra.mxu0 %v1005
        %1045 = vmatpush.bf16.msra.mxu0 %v1002
        %1046 = vmatpush.bf16.msra.mxu0 %v999
        %1047 = vmatpush.bf16.msra.mxu0 %v996
        %1048 = vmatpush.bf16.msra.mxu0 %v993
        %1049 = vmatmul.bf16.gmra.mxu0 %v911
        %v1050 = vpop.f32.mrf.mxu0
        %v1051 = vadd.f32 %v901, %v1050
        %v1052 = vpop.f32.mrf.mxu0
        %v1053 = vadd.f32 %v901, %v1052
        %1054 = vdwg.mxu0
        %1055 = vmatpush.bf16.msra.mxu0 %v1015
        %1056 = vmatpush.bf16.msra.mxu0 %v1012
        %1057 = vmatpush.bf16.msra.mxu0 %v1009
        %1058 = vmatpush.bf16.msra.mxu0 %v1006
        %1059 = vmatpush.bf16.msra.mxu0 %v1003
        %1060 = vmatpush.bf16.msra.mxu0 %v1000
        %1061 = vmatpush.bf16.msra.mxu0 %v997
        %1062 = vmatpush.bf16.msra.mxu0 %v994
        %1063 = vmatmul.bf16.gmra.mxu0 %v911
        %v1064 = vpop.f32.mrf.mxu0
        %v1065 = vadd.f32 %v902, %v1064
        %v1066 = vpop.f32.mrf.mxu0
        %v1067 = vadd.f32 %v902, %v1066
        %1068 = vdwg.mxu0
        %1069 = vmatpush.bf16.msra.mxu0 %v1016
        %1070 = vmatpush.bf16.msra.mxu0 %v1013
        %1071 = vmatpush.bf16.msra.mxu0 %v1010
        %1072 = vmatpush.bf16.msra.mxu0 %v1007
        %1073 = vmatpush.bf16.msra.mxu0 %v1004
        %1074 = vmatpush.bf16.msra.mxu0 %v1001
        %1075 = vmatpush.bf16.msra.mxu0 %v998
        %1076 = vmatpush.bf16.msra.mxu0 %v995
        %1077 = vmatmul.bf16.gmra.mxu0 %v911
        %v1078 = vpop.f32.mrf.mxu0
        %v1079 = vadd.f32 %v903, %v1078
        %v1080 = vpop.f32.mrf.mxu0
        %v1081 = vadd.f32 %v903, %v1080
        %1082 = vdwg.mxu0
        %v1083 = vpack.c.bf16 %v1051, %v1051
        %v1084 = vpack.c.bf16 %v1053, %v1053
        %v1085 = vpack.c.bf16 %v1065, %v1065
        %v1086 = vpack.c.bf16 %v1067, %v1067
        %1087 = vmatpush.bf16.xpose.msra.mxu0 0
        %1088 = vmatpush.bf16.xpose.msra.mxu0 0
        %1089 = vmatpush.bf16.xpose.msra.mxu0 0
        %1090 = vmatpush.bf16.xpose.msra.mxu0 0
        %1091 = vmatpush.bf16.xpose.msra.mxu0 0
        %1092 = vmatpush.bf16.xpose.msra.mxu0 0
        %1093 = vmatpush.bf16.xpose.msra.mxu0 0
        %1094 = vmatpush.bf16.xpose.msra.mxu0 %v1085
        %1095 = vmatmul.bf16.gmra.mxu0 %v1083
        %v1096 = vpop.f32.mrf.mxu0
        %v1097 = vadd.f32 0.0, %v1096
        %v1098 = vpop.f32.mrf.mxu0
        %1099 = vdwg.mxu0
        %1100 = vmatpush.bf16.xpose.msra.mxu0 0
        %1101 = vmatpush.bf16.xpose.msra.mxu0 0
        %1102 = vmatpush.bf16.xpose.msra.mxu0 0
        %1103 = vmatpush.bf16.xpose.msra.mxu0 0
        %1104 = vmatpush.bf16.xpose.msra.mxu0 0
        %1105 = vmatpush.bf16.xpose.msra.mxu0 0
        %1106 = vmatpush.bf16.xpose.msra.mxu0 0
        %1107 = vmatpush.bf16.xpose.msra.mxu0 %v1086
        %1108 = vmatmul.bf16.gmra.mxu0 %v1084
        %v1109 = vpop.f32.mrf.mxu0
        %v1110 = vadd.f32 0.0, %v1109
        %v1111 = vpop.f32.mrf.mxu0
        %1112 = vdwg.mxu0
        %v1113 = vmul.f32 %v1097, 0.17677669
        %v1114 = vmul.f32 %v1110, 0.17677669
        %vm1115 = vcmask 64512
        %v1116 = vsel %vm1115, %v1113, -inf
        %1117 = vmax.xlane.f32.xlu0 %v1116
        %v1118 = vpop.xlane.xlu0 %1117
        %v1119 = vsel %vm1115, %v1114, -inf
        %1120 = vmax.xlane.f32.xlu0 %v1119
        %v1121 = vpop.xlane.xlu0 %1120
        %v1122 = vsub.f32 %v1113, %v1118
        %v1123 = vsub.f32 %v1114, %v1121
        %v1124 = vmul.f32 %v1122, 1.442695
        %v1125 = vpow.pop %v1124
        %v1126 = vmul.f32 %v1123, 1.442695
        %v1127 = vpow.pop %v1126
        %v1128 = vsel %vm1115, %v1125, 0.0
        %1129 = vadd.xlane.f32.xlu0 %v1128
        %v1130 = vpop.xlane.xlu0 %1129
        %v1131 = vsel %vm1115, %v1127, 0.0
        %1132 = vadd.xlane.f32.xlu0 %v1131
        %v1133 = vpop.xlane.xlu0 %1132
        %v1134 = vrcp.pop %v1130
        %v1135 = vrcp.pop %v1133
        %v1136 = vmul.f32 %v1125, %v1134
        %v1137 = vmul.f32 %v1127, %v1135
        %1138 = vst.msk [vmem:[%s838] sm:$0xff] %vm1115, %v1136
        %1139 = vst.msk [vmem:[%s838 + $0x8] sm:$0xff] %vm1115, %v1137
        %v1140 = vpack.c.bf16 %v1136, %v1136
        %v1141 = vpack.c.bf16 %v1137, %v1137
        %v1142 = vpack.c.bf16 %v1079, %v1079
        %v1143 = vpack.c.bf16 %v1081, %v1081
        %v1145 = vsel %vm1115, %v1140, 0
        %vm1147 = vcmask 1043456
        %v1149 = vsel %vm1147, %v1142, 0
        %1151 = vmatpush.bf16.msra.mxu0 0
        %1152 = vmatpush.bf16.msra.mxu0 0
        %1153 = vmatpush.bf16.msra.mxu0 0
        %1154 = vmatpush.bf16.msra.mxu0 0
        %1155 = vmatpush.bf16.msra.mxu0 0
        %1156 = vmatpush.bf16.msra.mxu0 0
        %1157 = vmatpush.bf16.msra.mxu0 0
        %1158 = vmatpush.bf16.msra.mxu0 %v1149
        %1159 = vmatmul.bf16.gmra.mxu0 %v1145
        %v1160 = vpop.f32.mrf.mxu0
        %v1161 = vadd.f32 0.0, %v1160
        %v1162 = vpop.f32.mrf.mxu0
        %1163 = vdwg.mxu0
        %v1165 = vsel %vm1115, %v1141, 0
        %v1168 = vsel %vm1147, %v1143, 0
        %1170 = vmatpush.bf16.msra.mxu0 0
        %1171 = vmatpush.bf16.msra.mxu0 0
        %1172 = vmatpush.bf16.msra.mxu0 0
        %1173 = vmatpush.bf16.msra.mxu0 0
        %1174 = vmatpush.bf16.msra.mxu0 0
        %1175 = vmatpush.bf16.msra.mxu0 0
        %1176 = vmatpush.bf16.msra.mxu0 0
        %1177 = vmatpush.bf16.msra.mxu0 %v1168
        %1178 = vmatmul.bf16.gmra.mxu0 %v1165
        %v1179 = vpop.f32.mrf.mxu0
        %v1180 = vadd.f32 0.0, %v1179
        %v1181 = vpop.f32.mrf.mxu0
        %1182 = vdwg.mxu0
        %v1183 = vpack.c.bf16 %v1161, %v1161
        %v1184 = vpack.c.bf16 %v1180, %v1180
        %v1185 = vld [vmem:[%s708] sm:$0xf]
        %v1186 = vld [vmem:[%s708 + $0x4] sm:$0xf]
        %v1187 = vld [vmem:[%s708 + $0x8] sm:$0xf]
        %v1188 = vld [vmem:[%s708 + $0xc] sm:$0xf]
        %v1189 = vld [vmem:[%s708 + $0x10] sm:$0xf]
        %v1190 = vld [vmem:[%s708 + $0x14] sm:$0xf]
        %v1191 = vld [vmem:[%s708 + $0x18] sm:$0xf]
        %v1192 = vld [vmem:[%s708 + $0x1c] sm:$0xf]
        %v1193 = vld [vmem:[%s708 + $0x20] sm:$0xf]
        %v1194 = vld [vmem:[%s708 + $0x24] sm:$0xf]
        %v1195 = vld [vmem:[%s708 + $0x28] sm:$0xf]
        %v1196 = vld [vmem:[%s708 + $0x2c] sm:$0xf]
        %v1197 = vld [vmem:[%s708 + $0x30] sm:$0xf]
        %v1198 = vld [vmem:[%s708 + $0x34] sm:$0xf]
        %v1199 = vld [vmem:[%s708 + $0x38] sm:$0xf]
        %v1200 = vld [vmem:[%s708 + $0x3c] sm:$0xf]
        %v1201 = vld [vmem:[%s841] sm:$0x1]
        %v1203 = vperm.slane %v1201, 0
        %v1207 = vunpack.c.l.b16 %v1183
        %v1208 = vunpack.c.l.b16 %v1184
        %v1209 = vpack.c.b16 %v1208, %v1207
        %v1227 = vunpack.c.l.b16 %v1185
        %v1228 = vunpack.c.l.b16 %v1186
        %v1229 = vunpack.c.l.b16 %v1187
        %v1230 = vunpack.c.l.b16 %v1188
        %v1231 = vunpack.c.l.b16 %v1189
        %v1232 = vunpack.c.l.b16 %v1190
        %v1233 = vunpack.c.l.b16 %v1191
        %v1234 = vunpack.c.l.b16 %v1192
        %v1235 = vunpack.c.l.b16 %v1193
        %v1236 = vunpack.c.l.b16 %v1194
        %v1237 = vunpack.c.l.b16 %v1195
        %v1238 = vunpack.c.l.b16 %v1196
        %v1239 = vunpack.c.l.b16 %v1197
        %v1240 = vunpack.c.l.b16 %v1198
        %v1241 = vunpack.c.l.b16 %v1199
        %v1242 = vunpack.c.l.b16 %v1200
        %v1243 = vpack.c.b16 %v1228, %v1227
        %v1244 = vpack.c.b16 %v1230, %v1229
        %v1245 = vpack.c.b16 %v1232, %v1231
        %v1246 = vpack.c.b16 %v1234, %v1233
        %v1247 = vpack.c.b16 %v1236, %v1235
        %v1248 = vpack.c.b16 %v1238, %v1237
        %v1249 = vpack.c.b16 %v1240, %v1239
        %v1250 = vpack.c.b16 %v1242, %v1241
        %1259 = vmatpush.bf16.msra.mxu0 %v1250
        %1260 = vmatpush.bf16.msra.mxu0 %v1249
        %1261 = vmatpush.bf16.msra.mxu0 %v1248
        %1262 = vmatpush.bf16.msra.mxu0 %v1247
        %1263 = vmatpush.bf16.msra.mxu0 %v1246
        %1264 = vmatpush.bf16.msra.mxu0 %v1245
        %1265 = vmatpush.bf16.msra.mxu0 %v1244
        %1266 = vmatpush.bf16.msra.mxu0 %v1243
        %1267 = vmatmul.bf16.gmra.mxu0 %v1209
        %v1268 = vpop.f32.mrf.mxu0
        %v1269 = vadd.f32 %v1203, %v1268
        %v1270 = vpop.f32.mrf.mxu0
        %v1271 = vadd.f32 %v1203, %v1270
        %1272 = vdwg.mxu0
        %v1273 = vadd.f32 %v863, %v1269
        %v1274 = vadd.f32 %v864, %v1271
        %v1275 = vld [vmem:[%s844] sm:$0x1]
        %v1276 = vld [vmem:[%s717] sm:$0x1]
        %1277 = vadd.xlane.f32.xlu0 %v1273
        %v1278 = vpop.xlane.xlu0 %1277
        %1279 = vadd.xlane.f32.xlu0 %v1274
        %v1280 = vpop.xlane.xlu0 %1279
        %v1281 = vrcp.pop 32.0
        %v1282 = vmul.f32 32.0, %v1281
        %v1283 = vsub.f32 1.0, %v1282
        %v1284 = vmul.f32 %v1281, %v1283
        %v1285 = vadd.f32 %v1281, %v1284
        %vm1286 = vweird.f32 %v1281
        %v1287 = vsel %vm1286, %v1281, %v1285
        %v1288 = vmul.f32 %v1278, %v1287
        %v1289 = vmul.f32 %v1280, %v1287
        %v1290 = vmul.f32 %v1273, %v1273
        %v1291 = vmul.f32 %v1274, %v1274
        %1292 = vadd.xlane.f32.xlu0 %v1290
        %v1293 = vpop.xlane.xlu0 %1292
        %1294 = vadd.xlane.f32.xlu0 %v1291
        %v1295 = vpop.xlane.xlu0 %1294
        %v1296 = vmul.f32 %v1293, %v1287
        %v1297 = vmul.f32 %v1295, %v1287
        %v1298 = vmul.f32 %v1288, %v1288
        %v1299 = vmul.f32 %v1289, %v1289
        %v1300 = vsub.f32 %v1296, %v1298
        %v1301 = vsub.f32 %v1297, %v1299
        %v1302 = vmax.f32 %v1300, 0.0
        %v1303 = vmax.f32 %v1301, 0.0
        %v1304 = vsub.f32 %v1273, %v1288
        %v1305 = vsub.f32 %v1274, %v1289
        %v1306 = vadd.f32 %v1302, 1e-05
        %v1307 = vadd.f32 %v1303, 1e-05
        %v1308 = vrsqrt.pop %v1306
        %v1309 = vmul.f32 %v1308, %v1306
        %v1310 = vmul.f32 %v1309, %v1308
        %v1311 = vmul.f32 0.5, %v1310
        %v1312 = vsub.f32 1.5, %v1311
        %v1313 = vmul.f32 %v1308, %v1312
        %vm1314 = vweird.f32 %v1306
        %vm1315 = vweird.f32 %v1308
        %vm1316 = vmor %vm1314, %vm1315
        %v1317 = vsel %vm1316, %v1308, %v1313
        %v1318 = vrsqrt.pop %v1307
        %v1319 = vmul.f32 %v1318, %v1307
        %v1320 = vmul.f32 %v1319, %v1318
        %v1321 = vmul.f32 0.5, %v1320
        %v1322 = vsub.f32 1.5, %v1321
        %v1323 = vmul.f32 %v1318, %v1322
        %vm1324 = vweird.f32 %v1307
        %vm1325 = vweird.f32 %v1318
        %vm1326 = vmor %vm1324, %vm1325
        %v1327 = vsel %vm1326, %v1318, %v1323
        %v1328 = vmul.f32 %v1304, %v1317
        %v1329 = vmul.f32 %v1305, %v1327
        %v1331 = vperm.slane %v1275, 0
        %v1333 = vmul.f32 %v1328, %v1331
        %v1334 = vmul.f32 %v1329, %v1331
        %v1336 = vperm.slane %v1276, 0
        %v1338 = vadd.f32 %v1333, %v1336
        %v1339 = vadd.f32 %v1334, %v1336
        %v1340 = vpack.c.bf16 %v1338, %v1338
        %v1341 = vpack.c.bf16 %v1339, %v1339
        %v1342 = vld [vmem:[%s727] sm:$0xf]
        %v1343 = vld [vmem:[%s727 + $0x4] sm:$0xf]
        %v1344 = vld [vmem:[%s727 + $0x8] sm:$0xf]
        %v1345 = vld [vmem:[%s727 + $0xc] sm:$0xf]
        %v1346 = vld [vmem:[%s727 + $0x10] sm:$0xf]
        %v1347 = vld [vmem:[%s727 + $0x14] sm:$0xf]
        %v1348 = vld [vmem:[%s727 + $0x18] sm:$0xf]
        %v1349 = vld [vmem:[%s727 + $0x1c] sm:$0xf]
        %v1350 = vld [vmem:[%s727 + $0x20] sm:$0xf]
        %v1351 = vld [vmem:[%s727 + $0x24] sm:$0xf]
        %v1352 = vld [vmem:[%s727 + $0x28] sm:$0xf]
        %v1353 = vld [vmem:[%s727 + $0x2c] sm:$0xf]
        %v1354 = vld [vmem:[%s727 + $0x30] sm:$0xf]
        %v1355 = vld [vmem:[%s727 + $0x34] sm:$0xf]
        %v1356 = vld [vmem:[%s727 + $0x38] sm:$0xf]
        %v1357 = vld [vmem:[%s727 + $0x3c] sm:$0xf]
        %v1358 = vld [vmem:[%s847] sm:$0x1]
        %v1360 = vperm.slane %v1358, 0
        %v1364 = vunpack.c.l.b16 %v1340
        %v1365 = vunpack.c.l.b16 %v1341
        %v1366 = vpack.c.b16 %v1365, %v1364
        %v1384 = vunpack.c.l.b16 %v1342
        %v1385 = vunpack.c.l.b16 %v1343
        %v1386 = vunpack.c.l.b16 %v1344
        %v1387 = vunpack.c.l.b16 %v1345
        %v1388 = vunpack.c.l.b16 %v1346
        %v1389 = vunpack.c.l.b16 %v1347
        %v1390 = vunpack.c.l.b16 %v1348
        %v1391 = vunpack.c.l.b16 %v1349
        %v1392 = vunpack.c.l.b16 %v1350
        %v1393 = vunpack.c.l.b16 %v1351
        %v1394 = vunpack.c.l.b16 %v1352
        %v1395 = vunpack.c.l.b16 %v1353
        %v1396 = vunpack.c.l.b16 %v1354
        %v1397 = vunpack.c.l.b16 %v1355
        %v1398 = vunpack.c.l.b16 %v1356
        %v1399 = vunpack.c.l.b16 %v1357
        %v1400 = vpack.c.b16 %v1385, %v1384
        %v1401 = vpack.c.b16 %v1387, %v1386
        %v1402 = vpack.c.b16 %v1389, %v1388
        %v1403 = vpack.c.b16 %v1391, %v1390
        %v1404 = vpack.c.b16 %v1393, %v1392
        %v1405 = vpack.c.b16 %v1395, %v1394
        %v1406 = vpack.c.b16 %v1397, %v1396
        %v1407 = vpack.c.b16 %v1399, %v1398
        %1416 = vmatpush.bf16.msra.mxu0 %v1407
        %1417 = vmatpush.bf16.msra.mxu0 %v1406
        %1418 = vmatpush.bf16.msra.mxu0 %v1405
        %1419 = vmatpush.bf16.msra.mxu0 %v1404
        %1420 = vmatpush.bf16.msra.mxu0 %v1403
        %1421 = vmatpush.bf16.msra.mxu0 %v1402
        %1422 = vmatpush.bf16.msra.mxu0 %v1401
        %1423 = vmatpush.bf16.msra.mxu0 %v1400
        %1424 = vmatmul.bf16.gmra.mxu0 %v1366
        %v1425 = vpop.f32.mrf.mxu0
        %v1426 = vadd.f32 %v1360, %v1425
        %v1427 = vpop.f32.mrf.mxu0
        %v1428 = vadd.f32 %v1360, %v1427
        %1429 = vdwg.mxu0
        %v1430 = vmax.f32 %v1426, 0.0
        %v1431 = vmax.f32 %v1428, 0.0
        %v1432 = vpack.c.bf16 %v1430, %v1430
        %v1433 = vpack.c.bf16 %v1431, %v1431
        %v1434 = vld [vmem:[%s737] sm:$0xf]
        %v1435 = vld [vmem:[%s737 + $0x4] sm:$0xf]
        %v1436 = vld [vmem:[%s737 + $0x8] sm:$0xf]
        %v1437 = vld [vmem:[%s737 + $0xc] sm:$0xf]
        %v1438 = vld [vmem:[%s737 + $0x10] sm:$0xf]
        %v1439 = vld [vmem:[%s737 + $0x14] sm:$0xf]
        %v1440 = vld [vmem:[%s737 + $0x18] sm:$0xf]
        %v1441 = vld [vmem:[%s737 + $0x1c] sm:$0xf]
        %v1442 = vld [vmem:[%s737 + $0x20] sm:$0xf]
        %v1443 = vld [vmem:[%s737 + $0x24] sm:$0xf]
        %v1444 = vld [vmem:[%s737 + $0x28] sm:$0xf]
        %v1445 = vld [vmem:[%s737 + $0x2c] sm:$0xf]
        %v1446 = vld [vmem:[%s737 + $0x30] sm:$0xf]
        %v1447 = vld [vmem:[%s737 + $0x34] sm:$0xf]
        %v1448 = vld [vmem:[%s737 + $0x38] sm:$0xf]
        %v1449 = vld [vmem:[%s737 + $0x3c] sm:$0xf]
        %v1450 = vld [vmem:[%s850] sm:$0x1]
        %v1452 = vperm.slane %v1450, 0
        %v1456 = vunpack.c.l.b16 %v1432
        %v1457 = vunpack.c.l.b16 %v1433
        %v1458 = vpack.c.b16 %v1457, %v1456
        %v1476 = vunpack.c.l.b16 %v1434
        %v1477 = vunpack.c.l.b16 %v1435
        %v1478 = vunpack.c.l.b16 %v1436
        %v1479 = vunpack.c.l.b16 %v1437
        %v1480 = vunpack.c.l.b16 %v1438
        %v1481 = vunpack.c.l.b16 %v1439
        %v1482 = vunpack.c.l.b16 %v1440
        %v1483 = vunpack.c.l.b16 %v1441
        %v1484 = vunpack.c.l.b16 %v1442
        %v1485 = vunpack.c.l.b16 %v1443
        %v1486 = vunpack.c.l.b16 %v1444
        %v1487 = vunpack.c.l.b16 %v1445
        %v1488 = vunpack.c.l.b16 %v1446
        %v1489 = vunpack.c.l.b16 %v1447
        %v1490 = vunpack.c.l.b16 %v1448
        %v1491 = vunpack.c.l.b16 %v1449
        %v1492 = vpack.c.b16 %v1477, %v1476
        %v1493 = vpack.c.b16 %v1479, %v1478
        %v1494 = vpack.c.b16 %v1481, %v1480
        %v1495 = vpack.c.b16 %v1483, %v1482
        %v1496 = vpack.c.b16 %v1485, %v1484
        %v1497 = vpack.c.b16 %v1487, %v1486
        %v1498 = vpack.c.b16 %v1489, %v1488
        %v1499 = vpack.c.b16 %v1491, %v1490
        %1508 = vmatpush.bf16.msra.mxu0 %v1499
        %1509 = vmatpush.bf16.msra.mxu0 %v1498
        %1510 = vmatpush.bf16.msra.mxu0 %v1497
        %1511 = vmatpush.bf16.msra.mxu0 %v1496
        %1512 = vmatpush.bf16.msra.mxu0 %v1495
        %1513 = vmatpush.bf16.msra.mxu0 %v1494
        %1514 = vmatpush.bf16.msra.mxu0 %v1493
        %1515 = vmatpush.bf16.msra.mxu0 %v1492
        %1516 = vmatmul.bf16.gmra.mxu0 %v1458
        %v1517 = vpop.f32.mrf.mxu0
        %v1518 = vadd.f32 %v1452, %v1517
        %v1519 = vpop.f32.mrf.mxu0
        %v1520 = vadd.f32 %v1452, %v1519
        %1521 = vdwg.mxu0
        %v1522 = vadd.f32 %v1338, %v1518
        %v1523 = vadd.f32 %v1339, %v1520
        %v1524 = vld [vmem:[%s853] sm:$0x1]
        %v1525 = vld [vmem:[%s746] sm:$0x1]
        %1526 = vadd.xlane.f32.xlu0 %v1522
        %v1527 = vpop.xlane.xlu0 %1526
        %1528 = vadd.xlane.f32.xlu0 %v1523
        %v1529 = vpop.xlane.xlu0 %1528
        %v1530 = vmul.f32 %v1527, %v1287
        %v1531 = vmul.f32 %v1529, %v1287
        %v1532 = vmul.f32 %v1522, %v1522
        %v1533 = vmul.f32 %v1523, %v1523
        %1534 = vadd.xlane.f32.xlu0 %v1532
        %v1535 = vpop.xlane.xlu0 %1534
        %1536 = vadd.xlane.f32.xlu0 %v1533
        %v1537 = vpop.xlane.xlu0 %1536
        %v1538 = vmul.f32 %v1535, %v1287
        %v1539 = vmul.f32 %v1537, %v1287
        %v1540 = vmul.f32 %v1530, %v1530
        %v1541 = vmul.f32 %v1531, %v1531
        %v1542 = vsub.f32 %v1538, %v1540
        %v1543 = vsub.f32 %v1539, %v1541
        %v1544 = vmax.f32 %v1542, 0.0
        %v1545 = vmax.f32 %v1543, 0.0
        %v1546 = vsub.f32 %v1522, %v1530
        %v1547 = vsub.f32 %v1523, %v1531
        %v1548 = vadd.f32 %v1544, 1e-05
        %v1549 = vadd.f32 %v1545, 1e-05
        %v1550 = vrsqrt.pop %v1548
        %v1551 = vmul.f32 %v1550, %v1548
        %v1552 = vmul.f32 %v1551, %v1550
        %v1553 = vmul.f32 0.5, %v1552
        %v1554 = vsub.f32 1.5, %v1553
        %v1555 = vmul.f32 %v1550, %v1554
        %vm1556 = vweird.f32 %v1548
        %vm1557 = vweird.f32 %v1550
        %vm1558 = vmor %vm1556, %vm1557
        %v1559 = vsel %vm1558, %v1550, %v1555
        %v1560 = vrsqrt.pop %v1549
        %v1561 = vmul.f32 %v1560, %v1549
        %v1562 = vmul.f32 %v1561, %v1560
        %v1563 = vmul.f32 0.5, %v1562
        %v1564 = vsub.f32 1.5, %v1563
        %v1565 = vmul.f32 %v1560, %v1564
        %vm1566 = vweird.f32 %v1549
        %vm1567 = vweird.f32 %v1560
        %vm1568 = vmor %vm1566, %vm1567
        %v1569 = vsel %vm1568, %v1560, %v1565
        %v1570 = vmul.f32 %v1546, %v1559
        %v1571 = vmul.f32 %v1547, %v1569
        %v1573 = vperm.slane %v1524, 0
        %v1575 = vmul.f32 %v1570, %v1573
        %v1576 = vmul.f32 %v1571, %v1573
        %v1578 = vperm.slane %v1525, 0
        %v1580 = vadd.f32 %v1575, %v1578
        %v1581 = vadd.f32 %v1576, %v1578
        %p1582 = scmp.eq.s32.totalorder %s45, 1
        // Predicated region
        $region117: #{tpu_custom_call.1} parent=79 // pred_check
          %p1583 = pneg %p1582
        $region118: #{tpu_custom_call.1} parent=79 // pred_check_branch
          %1585 = sbr.rel (%p1583) target = $region120
        $region119: #{tpu_custom_call.1} parent=79 // pred_region
          %v1586 = vld [vmem:[%s13] sm:$0x1]
          %v1587 = vld [vmem:[%s14] sm:$0x1]
          %1588 = vadd.xlane.f32.xlu0 %v1580
          %v1589 = vpop.xlane.xlu0 %1588
          %1590 = vadd.xlane.f32.xlu0 %v1581
          %v1591 = vpop.xlane.xlu0 %1590
          %v1592 = vmul.f32 %v1589, %v1287
          %v1593 = vmul.f32 %v1591, %v1287
          %v1594 = vmul.f32 %v1580, %v1580
          %v1595 = vmul.f32 %v1581, %v1581
          %1596 = vadd.xlane.f32.xlu0 %v1594
          %v1597 = vpop.xlane.xlu0 %1596
          %1598 = vadd.xlane.f32.xlu0 %v1595
          %v1599 = vpop.xlane.xlu0 %1598
          %v1600 = vmul.f32 %v1597, %v1287
          %v1601 = vmul.f32 %v1599, %v1287
          %v1602 = vmul.f32 %v1592, %v1592
          %v1603 = vmul.f32 %v1593, %v1593
          %v1604 = vsub.f32 %v1600, %v1602
          %v1605 = vsub.f32 %v1601, %v1603
          %v1606 = vmax.f32 %v1604, 0.0
          %v1607 = vmax.f32 %v1605, 0.0
          %v1608 = vsub.f32 %v1580, %v1592
          %v1609 = vsub.f32 %v1581, %v1593
          %v1610 = vadd.f32 %v1606, 1e-05
          %v1611 = vadd.f32 %v1607, 1e-05
          %v1612 = vrsqrt.pop %v1610
          %v1613 = vmul.f32 %v1612, %v1610
          %v1614 = vmul.f32 %v1613, %v1612
          %v1615 = vmul.f32 0.5, %v1614
          %v1616 = vsub.f32 1.5, %v1615
          %v1617 = vmul.f32 %v1612, %v1616
          %vm1618 = vweird.f32 %v1610
          %vm1619 = vweird.f32 %v1612
          %vm1620 = vmor %vm1618, %vm1619
          %v1621 = vsel %vm1620, %v1612, %v1617
          %v1622 = vrsqrt.pop %v1611
          %v1623 = vmul.f32 %v1622, %v1611
          %v1624 = vmul.f32 %v1623, %v1622
          %v1625 = vmul.f32 0.5, %v1624
          %v1626 = vsub.f32 1.5, %v1625
          %v1627 = vmul.f32 %v1622, %v1626
          %vm1628 = vweird.f32 %v1611
          %vm1629 = vweird.f32 %v1622
          %vm1630 = vmor %vm1628, %vm1629
          %v1631 = vsel %vm1630, %v1622, %v1627
          %v1632 = vmul.f32 %v1608, %v1621
          %v1633 = vmul.f32 %v1609, %v1631
          %v1635 = vperm.slane %v1586, 0
          %v1637 = vmul.f32 %v1632, %v1635
          %v1638 = vmul.f32 %v1633, %v1635
          %v1640 = vperm.slane %v1587, 0
          %v1642 = vadd.f32 %v1637, %v1640
          %v1643 = vadd.f32 %v1638, %v1640
          %1644 = vst [vmem:[#allocation16] sm:$0xff] %v1642
          %1645 = vst [vmem:[#allocation16 + $0x8] sm:$0xff] %v1643
        $region120: #{tpu_custom_call.1} parent=79 // pred_fallthru
          _
        %p1646 = scmp.lt.s32.totalorder %s45, 1
        // Predicated region
        $region121: #{tpu_custom_call.1} parent=79 // pred_check
          %p1647 = pneg %p1646
        $region122: #{tpu_custom_call.1} parent=79 // pred_check_branch
          %1649 = sbr.rel (%p1647) target = $region124
        $region123: #{tpu_custom_call.1} parent=79 // pred_region
          %1650 = vst [vmem:[#allocation16] sm:$0xff] %v1580
          %1651 = vst [vmem:[#allocation16 + $0x8] sm:$0xff] %v1581
        $region124: #{tpu_custom_call.1} parent=79 // pred_fallthru
          _
        %s1652 = sand.u32 %s449, 1
        %s1653 = scalar_lea.sflag [#allocation18], %s1652
        %s1654 = sand.u32 %s449, 1
        %s1655 = smul.addr %s1654, 16
        %s1656 = scalar_lea.vmem [#allocation17], %s1655
        // Predicated region
        $region125: #{tpu_custom_call.1} parent=79 // pred_check
          %p1657 = pneg %p433
        $region126: #{tpu_custom_call.1} parent=79 // pred_check_branch
          %1659 = sbr.rel (%p1657) target = $region128
        $region127: #{tpu_custom_call.1} parent=79 // pred_region
          %1661 = vsyncadd [#allocation4], 0
          %s1662 = sshll.u32 [#allocation16], 4
          %s1663 = int_to_ptr.vmem [resolvable:$true] %s1662
          %s1664 = sshll.u32 %s15, 4
          %s1665 = int_to_ptr.hbm [resolvable:$true] %s1664
          %1670 = dma.vmem_to_hbm [thread:$0]  %s1663, 256, %s1665, [#allocation4], 128, 128, 8
        $region128: #{tpu_custom_call.1} parent=79 // pred_fallthru
          _
        // Predicated region
        $region129: #{tpu_custom_call.1} parent=79 // pred_check
          %p1671 = pneg %p459
        $region130: #{tpu_custom_call.1} parent=79 // pred_check_branch
          %1673 = sbr.rel (%p1671) target = $region132
        $region131: #{tpu_custom_call.1} parent=79 // pred_region
          %1675 = vsyncadd %s1653, 0
          %s1676 = smul.addr %s45, 2
          %s1677 = smul.addr %s1676, 8
          %s1678 = scalar_lea.hbm %s16, %s1677
          %s1679 = sshll.u32 %s1656, 4
          %s1680 = int_to_ptr.vmem [resolvable:$true] %s1679
          %s1681 = sshll.u32 %s1678, 4
          %s1682 = int_to_ptr.hbm [resolvable:$true] %s1681
          %1687 = dma.vmem_to_hbm [thread:$0]  %s1680, 256, %s1682, %s1653, 128, 128, 8
        $region132: #{tpu_custom_call.1} parent=79 // pred_fallthru
          _
        // Predicated region
        $region133: #{tpu_custom_call.1} parent=79 // pred_check
          %p1688 = pneg %p433
        $region134: #{tpu_custom_call.1} parent=79 // pred_check_branch
          %1690 = sbr.rel (%p1688) target = $region136
        $region135: #{tpu_custom_call.1} parent=79 // pred_region
          %1692 = dma.done [#allocation4], 256
        $region136: #{tpu_custom_call.1} parent=79 // pred_fallthru
          _
      $region80: #{tpu_custom_call.1} parent=5 // pred_fallthru
        _
      %p1693 = scmp.le.s32.totalorder 2, %s40
      // Predicated region
      $region137: #{tpu_custom_call.1} parent=5 // pred_check
        %p1694 = pneg %p1693
      $region138: #{tpu_custom_call.1} parent=5 // pred_check_branch
        %1696 = sbr.rel (%p1694) target = $region140
      $region139: #{tpu_custom_call.1} parent=5 // pred_region
        %s1697 = ssub.s32 %s40, 2
        // Predicated region
        $region141: #{tpu_custom_call.1} parent=139 // pred_check
          %p1698 = pneg %p465
        $region142: #{tpu_custom_call.1} parent=139 // pred_check_branch
          %1700 = sbr.rel (%p1698) target = $region144
        $region143: #{tpu_custom_call.1} parent=139 // pred_region
          %s1701 = sand.u32 %s450, 1
          %s1702 = scalar_lea.sflag [#allocation18], %s1701
          %s1703 = sand.u32 %s450, 1
          %s1704 = smul.addr %s1703, 16
          %s1705 = scalar_lea.vmem [#allocation17], %s1704
          %1707 = dma.done %s1702, 256
        $region144: #{tpu_custom_call.1} parent=139 // pred_fallthru
          _
      $region140: #{tpu_custom_call.1} parent=5 // pred_fallthru
        _
    $region6: #{tpu_custom_call.1} parent=1 // loop_footer
      %s44 = sadd.s32 1, %s40
    $region7: #{tpu_custom_call.1} parent=1 // loop_footer_branch
      %39 = sbr.rel target = $region3
    $region8: #{tpu_custom_call.1} parent=1 // loop_exit
      _
    %1708 = vsyncpa [#allocation3], 1
    %s1709 = scalar_lea.sflag [#allocation3], 1
    %1710 = vsyncpa %s1709, 1
    %1711 = vsyncpa [#allocation6], 1
    %s1712 = scalar_lea.sflag [#allocation6], 1
    %1713 = vsyncpa %s1712, 1
    %1714 = vsyncpa [#allocation9], 1
    %s1715 = scalar_lea.sflag [#allocation9], 1
    %1716 = vsyncpa %s1715, 1
    %1717 = vsyncpa [#allocation12], 1
    %s1718 = scalar_lea.sflag [#allocation12], 1
    %1719 = vsyncpa %s1718, 1
    %1720 = vsyncpa [#allocation15], 1
    %s1721 = scalar_lea.sflag [#allocation15], 1
    %1722 = vsyncpa %s1721, 1
    %1723 = vsyncpa [#allocation4], 1
    %s1724 = scalar_lea.sflag [#allocation4], 1
    %1725 = vsyncpa %s1724, 1
    %1726 = vsyncpa [#allocation18], 1
    %s1727 = scalar_lea.sflag [#allocation18], 1
    %1728 = vsyncpa %s1727, 1

</llo_original>
